<compile_context>
chip_gen: v6e
topology: v6e:2x2x1
jax: 0.10.0
libtpu: 0.0.40
codegen_flags: <defaults>
</compile_context>

<pallas_src>
import math
import functools

import jax
import jax.numpy as jnp
from jax.experimental import pallas as pl
from jax.experimental.pallas import tpu as pltpu  # noqa: F401  (TPU backend)

# ---------------- model hyper-parameters (small, consistent with the module) --
BATCH = 2
SEQ = 8
HIDDEN = 32
FF_DIM = 64
NUM_HEADS = 4
HEAD_DIM = HIDDEN // NUM_HEADS
LN_EPS = 1e-5
LEAKY_SLOPE = 0.01  # nn.LeakyReLU default negative_slope
MASK_BIAS = -1e30   # large finite negative (avoids NaN if a row is fully padded)


def _encoder_block_kernel(
    x_ref,        # (N*S, E)      batch-folded activations
    bias_ref,     # (N*S, N*S)    combined block-diagonal + key-padding additive mask
    wq_ref,       # (E, E)        all-heads Q weight, head-contiguous cols, pre-scaled
    wk_ref,       # (E, E)
    wv_ref,       # (E, E)
    bq_ref,       # (1, E)        pre-scaled
    bk_ref,       # (1, E)
    bv_ref,       # (1, E)
    wo_ref,       # (H, d, E)     per-head block rows of the o_proj weight
    bo_ref,       # (1, E)
    g1_ref,       # (1, E)        layer_norm1 gamma
    be1_ref,      # (1, E)        layer_norm1 beta
    w1_ref,       # (E, F)        feed-forward linear 1 (transposed: x @ W)
    b1_ref,       # (1, F)
    w2_ref,       # (F, E)        feed-forward linear 2 (transposed)
    b2_ref,       # (1, E)
    g2_ref,       # (1, E)        layer_norm2 gamma
    be2_ref,      # (1, E)        layer_norm2 beta
    o_ref,        # (N*S, E)
    *, num_heads, head_dim,
):
    x = x_ref[...]                       # (N*S, E)
    bias = bias_ref[...]                 # (N*S, N*S) loaded/broadcast ONCE

    # ---- multi-head self attention ------------------------------------------
    # Fused all-heads projections: one wide matmul each (softmax scale already
    # folded into wq / bq at prep time).
    q = jnp.dot(x, wq_ref[...], preferred_element_type=jnp.float32) + bq_ref[...]
    k = jnp.dot(x, wk_ref[...], preferred_element_type=jnp.float32) + bk_ref[...]
    v = jnp.dot(x, wv_ref[...], preferred_element_type=jnp.float32) + bv_ref[...]

    attn_acc = None
    for h in range(num_heads):                       # unrolled (H = 4)
        lo = h * head_dim                            # static, 8-lane-aligned window
        qh = q[:, lo:lo + head_dim]                  # (N*S, d)
        kh = k[:, lo:lo + head_dim]                  # (N*S, d)
        vh = v[:, lo:lo + head_dim]                  # (N*S, d)

        # Batch-folded QK^T (contract last axes, no explicit transpose); the
        # additive mask enforces batch separation + key padding.
        logits = jax.lax.dot_general(
            qh, kh, (((1,), (1,)), ((), ())),
            preferred_element_type=jnp.float32,
        ) + bias                                     # (N*S, N*S)

        m = jnp.max(logits, axis=-1, keepdims=True)
        p = jnp.exp(logits - m)
        inv = pl.reciprocal(jnp.sum(p, axis=-1, keepdims=True), approx=False)
        attn = p * inv
        ctx = jnp.dot(attn, vh, preferred_element_type=jnp.float32)     # (N*S, d)

        contrib = jnp.dot(ctx, wo_ref[h], preferred_element_type=jnp.float32)
        attn_acc = contrib if attn_acc is None else attn_acc + contrib

    attn_out = attn_acc + bo_ref[...]                # (N*S, E)

    # dropout1 is identity at inference
    # ---- residual + layer_norm1 (var = E[x^2] - E[x]^2) -----------------------
    h1 = x + attn_out
    mu1 = jnp.mean(h1, axis=-1, keepdims=True)
    ms1 = jnp.mean(h1 * h1, axis=-1, keepdims=True)
    var1 = ms1 - mu1 * mu1
    h1n = (h1 - mu1) * jax.lax.rsqrt(var1 + LN_EPS) * g1_ref[...] + be1_ref[...]

    # ---- feed forward: Linear -> LeakyReLU -> Linear (batch-folded) -----------
    ff = jnp.dot(h1n, w1_ref[...], preferred_element_type=jnp.float32) + b1_ref[...]
    ff = jnp.where(ff >= 0.0, ff, LEAKY_SLOPE * ff)
    ff = jnp.dot(ff, w2_ref[...], preferred_element_type=jnp.float32) + b2_ref[...]

    # dropout2 is identity at inference
    # ---- residual + layer_norm2 ----------------------------------------------
    h2 = h1n + ff
    mu2 = jnp.mean(h2, axis=-1, keepdims=True)
    ms2 = jnp.mean(h2 * h2, axis=-1, keepdims=True)
    var2 = ms2 - mu2 * mu2
    o_ref[...] = (h2 - mu2) * jax.lax.rsqrt(var2 + LN_EPS) * g2_ref[...] + be2_ref[...]


def _prep_attention_weights(params):
    """Split fused qkv / o_proj weights for the kernel (trace-time transform).

    Assumes the fused qkv weight (E, 3E, already transposed so x @ W) has
    per-head interleaved columns [q_h | k_h | v_h] of HEAD_DIM each (the layout
    of the custom MultiHeadAttention that reshapes qkv to (..., H, 3*d) and
    chunks).  For torch.nn.MultiheadAttention's stacked [Q; K; V] in_proj a
    different column permutation would be required.

    The softmax scale 1/sqrt(d) is folded into wq and bq here (free at
    runtime).  Q/K/V are emitted as (E, E) with HEAD-CONTIGUOUS columns so the
    kernel's per-head views are static aligned lane windows.
    """
    E, H, d = HIDDEN, NUM_HEADS, HEAD_DIM
    scale = 1.0 / math.sqrt(d)
    w3 = params["wqkv"].reshape(E, H, 3, d)                 # (E, H, 3, d)
    wq = (w3[:, :, 0, :] * scale).reshape(E, E)             # head-contiguous cols
    wk = w3[:, :, 1, :].reshape(E, E)
    wv = w3[:, :, 2, :].reshape(E, E)
    b3 = params["bqkv"].reshape(H, 3, d)
    bq = (b3[:, 0, :] * scale).reshape(1, E)
    bk = b3[:, 1, :].reshape(1, E)
    bv = b3[:, 2, :].reshape(1, E)
    # o_proj (E, E) transposed weight: rows are the concatenated-head input dim.
    wo_h = params["wo"].reshape(H, d, E)                    # (H, d, E)
    return wq, wk, wv, bq, bk, bv, wo_h


def _build_attention_bias(src_padding_mask, n_batch, seq):
    """Combined (N*S, N*S) additive mask: block-diagonal batch separation +
    key padding.  0 where attention is allowed, MASK_BIAS otherwise (finite,
    so fully-padded rows give a uniform distribution instead of NaN)."""
    ns = n_batch * seq
    batch_ids = jnp.repeat(jnp.arange(n_batch), seq)                 # (N*S,)
    same_batch = batch_ids[:, None] == batch_ids[None, :]            # (N*S, N*S)
    key_valid = (src_padding_mask.reshape(ns).astype(jnp.float32) != 0.0)
    allowed = jnp.logical_and(same_batch, key_valid[None, :])
    return jnp.where(allowed, 0.0, MASK_BIAS).astype(jnp.float32)


def encoder_block(x, src_padding_mask, params):
    """x: (N, S, E) float32; src_padding_mask: (N, S) bool/int (1 = valid)."""
    N, S, E = x.shape
    x2d = x.reshape(N * S, E)
    bias = _build_attention_bias(src_padding_mask, N, S)             # (N*S, N*S)

    wq, wk, wv, bq, bk, bv, wo_h = _prep_attention_weights(params)

    kernel = functools.partial(
        _encoder_block_kernel, num_heads=NUM_HEADS, head_dim=HEAD_DIM,
    )

    # Single invocation, no grid: everything (a few KB) lives in VMEM.
    out = pl.pallas_call(
        kernel,
        out_shape=jax.ShapeDtypeStruct((N * S, E), jnp.float32),
    )(
        x2d, bias,
        wq, wk, wv, bq, bk, bv,
        wo_h, params["bo"],
        params["gamma1"], params["beta1"],
        params["w1"], params["b1"],
        params["w2"], params["b2"],
        params["gamma2"], params["beta2"],
    )
    return out.reshape(N, S, E)


def init_params(key):
    """Deterministic synthetic parameters (xavier-like uniform, zero biases)."""
    ks = jax.random.split(key, 4)

    def xavier(k, fan_in, fan_out, shape):
        bound = math.sqrt(6.0 / (fan_in + fan_out))
        return jax.random.uniform(k, shape, jnp.float32, -bound, bound)

    return {
        # stored pre-transposed so the kernel computes x @ W
        "wqkv": xavier(ks[0], HIDDEN, 3 * HIDDEN, (HIDDEN, 3 * HIDDEN)),
        "bqkv": jnp.zeros((1, 3 * HIDDEN), jnp.float32),
        "wo": xavier(ks[1], HIDDEN, HIDDEN, (HIDDEN, HIDDEN)),
        "bo": jnp.zeros((1, HIDDEN), jnp.float32),
        "gamma1": jnp.ones((1, HIDDEN), jnp.float32),
        "beta1": jnp.zeros((1, HIDDEN), jnp.float32),
        "w1": xavier(ks[2], HIDDEN, FF_DIM, (HIDDEN, FF_DIM)),
        "b1": jnp.zeros((1, FF_DIM), jnp.float32),
        "w2": xavier(ks[3], FF_DIM, HIDDEN, (FF_DIM, HIDDEN)),
        "b2": jnp.zeros((1, HIDDEN), jnp.float32),
        "gamma2": jnp.ones((1, HIDDEN), jnp.float32),
        "beta2": jnp.zeros((1, HIDDEN), jnp.float32),
    }


if __name__ == "__main__":
    key = jax.random.PRNGKey(0)
    k_x, k_p = jax.random.split(key)

    x = jax.random.normal(k_x, (BATCH, SEQ, HIDDEN), jnp.float32)
    # padding mask: last two tokens of batch element 1 are padding
    src_padding_mask = jnp.ones((BATCH, SEQ), jnp.int32).at[1, SEQ - 2:].set(0)

    params = init_params(k_p)

    out = encoder_block(x, src_padding_mask, params)
    out = jax.block_until_ready(out)
    assert out.shape == (BATCH, SEQ, HIDDEN)
    assert bool(jnp.all(jnp.isfinite(out)))
    print("KERNEL_OK")
</pallas_src>

<mosaic_0001>
module attributes {stable_mosaic.version = 11 : i64} {
  func.func @_encoder_block_kernel(%arg0: memref<16x32xf32, #tpu.memory_space<vmem>>, %arg1: memref<16x16xf32, #tpu.memory_space<vmem>>, %arg2: memref<32x32xf32, #tpu.memory_space<vmem>>, %arg3: memref<32x32xf32, #tpu.memory_space<vmem>>, %arg4: memref<32x32xf32, #tpu.memory_space<vmem>>, %arg5: memref<1x32xf32, #tpu.memory_space<vmem>>, %arg6: memref<1x32xf32, #tpu.memory_space<vmem>>, %arg7: memref<1x32xf32, #tpu.memory_space<vmem>>, %arg8: memref<4x8x32xf32, #tpu.memory_space<vmem>>, %arg9: memref<1x32xf32, #tpu.memory_space<vmem>>, %arg10: memref<1x32xf32, #tpu.memory_space<vmem>>, %arg11: memref<1x32xf32, #tpu.memory_space<vmem>>, %arg12: memref<32x64xf32, #tpu.memory_space<vmem>>, %arg13: memref<1x64xf32, #tpu.memory_space<vmem>>, %arg14: memref<64x32xf32, #tpu.memory_space<vmem>>, %arg15: memref<1x32xf32, #tpu.memory_space<vmem>>, %arg16: memref<1x32xf32, #tpu.memory_space<vmem>>, %arg17: memref<1x32xf32, #tpu.memory_space<vmem>>, %arg18: memref<16x32xf32, #tpu.memory_space<vmem>>) attributes {dimension_semantics = [], scalar_prefetch = 0 : i64, scratch_operands = 0 : i64, tpu.core_type = #tpu.core_type<tc>} {
    %c0 = arith.constant 0 : index
    %c0_0 = arith.constant 0 : index
    %0 = vector.load %arg0[%c0, %c0_0] : memref<16x32xf32, #tpu.memory_space<vmem>>, vector<16x32xf32>
    %c0_1 = arith.constant 0 : index
    %c0_2 = arith.constant 0 : index
    %1 = vector.load %arg1[%c0_1, %c0_2] : memref<16x16xf32, #tpu.memory_space<vmem>>, vector<16x16xf32>
    %c0_3 = arith.constant 0 : index
    %c0_4 = arith.constant 0 : index
    %2 = vector.load %arg2[%c0_3, %c0_4] : memref<32x32xf32, #tpu.memory_space<vmem>>, vector<32x32xf32>
    %cst = arith.constant dense<0.000000e+00> : vector<16x32xf32>
    %3 = tpu.matmul %0, %2, %cst {dimension_numbers = #tpu.dot_dimension_numbers<[1], [0], [0], [1], [0, 0, 1, 1], [], []>} : vector<16x32xf32>, vector<32x32xf32>, vector<16x32xf32> -> vector<16x32xf32>
    %c0_5 = arith.constant 0 : index
    %c0_6 = arith.constant 0 : index
    %4 = vector.load %arg5[%c0_5, %c0_6] : memref<1x32xf32, #tpu.memory_space<vmem>>, vector<1x32xf32>
    %5 = vector.broadcast %4 : vector<1x32xf32> to vector<16x32xf32>
    %6 = arith.addf %3, %5 : vector<16x32xf32>
    %c0_7 = arith.constant 0 : index
    %c0_8 = arith.constant 0 : index
    %7 = vector.load %arg3[%c0_7, %c0_8] : memref<32x32xf32, #tpu.memory_space<vmem>>, vector<32x32xf32>
    %cst_9 = arith.constant dense<0.000000e+00> : vector<16x32xf32>
    %8 = tpu.matmul %0, %7, %cst_9 {dimension_numbers = #tpu.dot_dimension_numbers<[1], [0], [0], [1], [0, 0, 1, 1], [], []>} : vector<16x32xf32>, vector<32x32xf32>, vector<16x32xf32> -> vector<16x32xf32>
    %c0_10 = arith.constant 0 : index
    %c0_11 = arith.constant 0 : index
    %9 = vector.load %arg6[%c0_10, %c0_11] : memref<1x32xf32, #tpu.memory_space<vmem>>, vector<1x32xf32>
    %10 = vector.broadcast %9 : vector<1x32xf32> to vector<16x32xf32>
    %11 = arith.addf %8, %10 : vector<16x32xf32>
    %c0_12 = arith.constant 0 : index
    %c0_13 = arith.constant 0 : index
    %12 = vector.load %arg4[%c0_12, %c0_13] : memref<32x32xf32, #tpu.memory_space<vmem>>, vector<32x32xf32>
    %cst_14 = arith.constant dense<0.000000e+00> : vector<16x32xf32>
    %13 = tpu.matmul %0, %12, %cst_14 {dimension_numbers = #tpu.dot_dimension_numbers<[1], [0], [0], [1], [0, 0, 1, 1], [], []>} : vector<16x32xf32>, vector<32x32xf32>, vector<16x32xf32> -> vector<16x32xf32>
    %c0_15 = arith.constant 0 : index
    %c0_16 = arith.constant 0 : index
    %14 = vector.load %arg7[%c0_15, %c0_16] : memref<1x32xf32, #tpu.memory_space<vmem>>, vector<1x32xf32>
    %15 = vector.broadcast %14 : vector<1x32xf32> to vector<16x32xf32>
    %16 = arith.addf %13, %15 : vector<16x32xf32>
    %17 = vector.extract_strided_slice %6 {offsets = [0, 0], sizes = [16, 8], strides = [1, 1]} : vector<16x32xf32> to vector<16x8xf32>
    %18 = vector.extract_strided_slice %11 {offsets = [0, 0], sizes = [16, 8], strides = [1, 1]} : vector<16x32xf32> to vector<16x8xf32>
    %19 = vector.extract_strided_slice %16 {offsets = [0, 0], sizes = [16, 8], strides = [1, 1]} : vector<16x32xf32> to vector<16x8xf32>
    %cst_17 = arith.constant dense<0.000000e+00> : vector<16x16xf32>
    %20 = tpu.matmul %17, %18, %cst_17 {dimension_numbers = #tpu.dot_dimension_numbers<[1], [1], [0], [0], [0, 0, 1, 0], [], []>} : vector<16x8xf32>, vector<16x8xf32>, vector<16x16xf32> -> vector<16x16xf32>
    %21 = arith.addf %20, %1 : vector<16x16xf32>
    %cst_18 = arith.constant dense<0xFF800000> : vector<16xf32>
    %22 = vector.multi_reduction <maximumf>, %21, %cst_18 [1] : vector<16x16xf32> to vector<16xf32>
    %23 = vector.shape_cast %22 : vector<16xf32> to vector<16x1xf32>
    %24 = vector.broadcast %23 : vector<16x1xf32> to vector<16x16xf32>
    %25 = arith.subf %21, %24 : vector<16x16xf32>
    %26 = math.exp %25 : vector<16x16xf32>
    %cst_19 = arith.constant dense<0.000000e+00> : vector<16xf32>
    %27 = vector.multi_reduction <add>, %26, %cst_19 [1] : vector<16x16xf32> to vector<16xf32>
    %28 = vector.shape_cast %27 : vector<16xf32> to vector<16x1xf32>
    %29 = tpu.reciprocal %28 : vector<16x1xf32> -> vector<16x1xf32>
    %30 = vector.broadcast %29 : vector<16x1xf32> to vector<16x16xf32>
    %31 = arith.mulf %26, %30 : vector<16x16xf32>
    %cst_20 = arith.constant dense<0.000000e+00> : vector<16x8xf32>
    %32 = tpu.matmul %31, %19, %cst_20 {dimension_numbers = #tpu.dot_dimension_numbers<[1], [0], [0], [1], [0, 0, 1, 1], [], []>} : vector<16x16xf32>, vector<16x8xf32>, vector<16x8xf32> -> vector<16x8xf32>
    %c0_21 = arith.constant 0 : index
    %c0_22 = arith.constant 0 : index
    %c0_23 = arith.constant 0 : index
    %33 = vector.load %arg8[%c0_21, %c0_22, %c0_23] : memref<4x8x32xf32, #tpu.memory_space<vmem>>, vector<1x8x32xf32>
    %34 = vector.shape_cast %33 : vector<1x8x32xf32> to vector<8x32xf32>
    %cst_24 = arith.constant dense<0.000000e+00> : vector<16x32xf32>
    %35 = tpu.matmul %32, %34, %cst_24 {dimension_numbers = #tpu.dot_dimension_numbers<[1], [0], [0], [1], [0, 0, 1, 1], [], []>} : vector<16x8xf32>, vector<8x32xf32>, vector<16x32xf32> -> vector<16x32xf32>
    %36 = vector.extract_strided_slice %6 {offsets = [0, 8], sizes = [16, 8], strides = [1, 1]} : vector<16x32xf32> to vector<16x8xf32>
    %37 = vector.extract_strided_slice %11 {offsets = [0, 8], sizes = [16, 8], strides = [1, 1]} : vector<16x32xf32> to vector<16x8xf32>
    %38 = vector.extract_strided_slice %16 {offsets = [0, 8], sizes = [16, 8], strides = [1, 1]} : vector<16x32xf32> to vector<16x8xf32>
    %cst_25 = arith.constant dense<0.000000e+00> : vector<16x16xf32>
    %39 = tpu.matmul %36, %37, %cst_25 {dimension_numbers = #tpu.dot_dimension_numbers<[1], [1], [0], [0], [0, 0, 1, 0], [], []>} : vector<16x8xf32>, vector<16x8xf32>, vector<16x16xf32> -> vector<16x16xf32>
    %40 = arith.addf %39, %1 : vector<16x16xf32>
    %cst_26 = arith.constant dense<0xFF800000> : vector<16xf32>
    %41 = vector.multi_reduction <maximumf>, %40, %cst_26 [1] : vector<16x16xf32> to vector<16xf32>
    %42 = vector.shape_cast %41 : vector<16xf32> to vector<16x1xf32>
    %43 = vector.broadcast %42 : vector<16x1xf32> to vector<16x16xf32>
    %44 = arith.subf %40, %43 : vector<16x16xf32>
    %45 = math.exp %44 : vector<16x16xf32>
    %cst_27 = arith.constant dense<0.000000e+00> : vector<16xf32>
    %46 = vector.multi_reduction <add>, %45, %cst_27 [1] : vector<16x16xf32> to vector<16xf32>
    %47 = vector.shape_cast %46 : vector<16xf32> to vector<16x1xf32>
    %48 = tpu.reciprocal %47 : vector<16x1xf32> -> vector<16x1xf32>
    %49 = vector.broadcast %48 : vector<16x1xf32> to vector<16x16xf32>
    %50 = arith.mulf %45, %49 : vector<16x16xf32>
    %cst_28 = arith.constant dense<0.000000e+00> : vector<16x8xf32>
    %51 = tpu.matmul %50, %38, %cst_28 {dimension_numbers = #tpu.dot_dimension_numbers<[1], [0], [0], [1], [0, 0, 1, 1], [], []>} : vector<16x16xf32>, vector<16x8xf32>, vector<16x8xf32> -> vector<16x8xf32>
    %c1 = arith.constant 1 : index
    %c0_29 = arith.constant 0 : index
    %c0_30 = arith.constant 0 : index
    %52 = vector.load %arg8[%c1, %c0_29, %c0_30] : memref<4x8x32xf32, #tpu.memory_space<vmem>>, vector<1x8x32xf32>
    %53 = vector.shape_cast %52 : vector<1x8x32xf32> to vector<8x32xf32>
    %cst_31 = arith.constant dense<0.000000e+00> : vector<16x32xf32>
    %54 = tpu.matmul %51, %53, %cst_31 {dimension_numbers = #tpu.dot_dimension_numbers<[1], [0], [0], [1], [0, 0, 1, 1], [], []>} : vector<16x8xf32>, vector<8x32xf32>, vector<16x32xf32> -> vector<16x32xf32>
    %55 = arith.addf %35, %54 : vector<16x32xf32>
    %56 = vector.extract_strided_slice %6 {offsets = [0, 16], sizes = [16, 8], strides = [1, 1]} : vector<16x32xf32> to vector<16x8xf32>
    %57 = vector.extract_strided_slice %11 {offsets = [0, 16], sizes = [16, 8], strides = [1, 1]} : vector<16x32xf32> to vector<16x8xf32>
    %58 = vector.extract_strided_slice %16 {offsets = [0, 16], sizes = [16, 8], strides = [1, 1]} : vector<16x32xf32> to vector<16x8xf32>
    %cst_32 = arith.constant dense<0.000000e+00> : vector<16x16xf32>
    %59 = tpu.matmul %56, %57, %cst_32 {dimension_numbers = #tpu.dot_dimension_numbers<[1], [1], [0], [0], [0, 0, 1, 0], [], []>} : vector<16x8xf32>, vector<16x8xf32>, vector<16x16xf32> -> vector<16x16xf32>
    %60 = arith.addf %59, %1 : vector<16x16xf32>
    %cst_33 = arith.constant dense<0xFF800000> : vector<16xf32>
    %61 = vector.multi_reduction <maximumf>, %60, %cst_33 [1] : vector<16x16xf32> to vector<16xf32>
    %62 = vector.shape_cast %61 : vector<16xf32> to vector<16x1xf32>
    %63 = vector.broadcast %62 : vector<16x1xf32> to vector<16x16xf32>
    %64 = arith.subf %60, %63 : vector<16x16xf32>
    %65 = math.exp %64 : vector<16x16xf32>
    %cst_34 = arith.constant dense<0.000000e+00> : vector<16xf32>
    %66 = vector.multi_reduction <add>, %65, %cst_34 [1] : vector<16x16xf32> to vector<16xf32>
    %67 = vector.shape_cast %66 : vector<16xf32> to vector<16x1xf32>
    %68 = tpu.reciprocal %67 : vector<16x1xf32> -> vector<16x1xf32>
    %69 = vector.broadcast %68 : vector<16x1xf32> to vector<16x16xf32>
    %70 = arith.mulf %65, %69 : vector<16x16xf32>
    %cst_35 = arith.constant dense<0.000000e+00> : vector<16x8xf32>
    %71 = tpu.matmul %70, %58, %cst_35 {dimension_numbers = #tpu.dot_dimension_numbers<[1], [0], [0], [1], [0, 0, 1, 1], [], []>} : vector<16x16xf32>, vector<16x8xf32>, vector<16x8xf32> -> vector<16x8xf32>
    %c2 = arith.constant 2 : index
    %c0_36 = arith.constant 0 : index
    %c0_37 = arith.constant 0 : index
    %72 = vector.load %arg8[%c2, %c0_36, %c0_37] : memref<4x8x32xf32, #tpu.memory_space<vmem>>, vector<1x8x32xf32>
    %73 = vector.shape_cast %72 : vector<1x8x32xf32> to vector<8x32xf32>
    %cst_38 = arith.constant dense<0.000000e+00> : vector<16x32xf32>
    %74 = tpu.matmul %71, %73, %cst_38 {dimension_numbers = #tpu.dot_dimension_numbers<[1], [0], [0], [1], [0, 0, 1, 1], [], []>} : vector<16x8xf32>, vector<8x32xf32>, vector<16x32xf32> -> vector<16x32xf32>
    %75 = arith.addf %55, %74 : vector<16x32xf32>
    %76 = vector.extract_strided_slice %6 {offsets = [0, 24], sizes = [16, 8], strides = [1, 1]} : vector<16x32xf32> to vector<16x8xf32>
    %77 = vector.extract_strided_slice %11 {offsets = [0, 24], sizes = [16, 8], strides = [1, 1]} : vector<16x32xf32> to vector<16x8xf32>
    %78 = vector.extract_strided_slice %16 {offsets = [0, 24], sizes = [16, 8], strides = [1, 1]} : vector<16x32xf32> to vector<16x8xf32>
    %cst_39 = arith.constant dense<0.000000e+00> : vector<16x16xf32>
    %79 = tpu.matmul %76, %77, %cst_39 {dimension_numbers = #tpu.dot_dimension_numbers<[1], [1], [0], [0], [0, 0, 1, 0], [], []>} : vector<16x8xf32>, vector<16x8xf32>, vector<16x16xf32> -> vector<16x16xf32>
    %80 = arith.addf %79, %1 : vector<16x16xf32>
    %cst_40 = arith.constant dense<0xFF800000> : vector<16xf32>
    %81 = vector.multi_reduction <maximumf>, %80, %cst_40 [1] : vector<16x16xf32> to vector<16xf32>
    %82 = vector.shape_cast %81 : vector<16xf32> to vector<16x1xf32>
    %83 = vector.broadcast %82 : vector<16x1xf32> to vector<16x16xf32>
    %84 = arith.subf %80, %83 : vector<16x16xf32>
    %85 = math.exp %84 : vector<16x16xf32>
    %cst_41 = arith.constant dense<0.000000e+00> : vector<16xf32>
    %86 = vector.multi_reduction <add>, %85, %cst_41 [1] : vector<16x16xf32> to vector<16xf32>
    %87 = vector.shape_cast %86 : vector<16xf32> to vector<16x1xf32>
    %88 = tpu.reciprocal %87 : vector<16x1xf32> -> vector<16x1xf32>
    %89 = vector.broadcast %88 : vector<16x1xf32> to vector<16x16xf32>
    %90 = arith.mulf %85, %89 : vector<16x16xf32>
    %cst_42 = arith.constant dense<0.000000e+00> : vector<16x8xf32>
    %91 = tpu.matmul %90, %78, %cst_42 {dimension_numbers = #tpu.dot_dimension_numbers<[1], [0], [0], [1], [0, 0, 1, 1], [], []>} : vector<16x16xf32>, vector<16x8xf32>, vector<16x8xf32> -> vector<16x8xf32>
    %c3 = arith.constant 3 : index
    %c0_43 = arith.constant 0 : index
    %c0_44 = arith.constant 0 : index
    %92 = vector.load %arg8[%c3, %c0_43, %c0_44] : memref<4x8x32xf32, #tpu.memory_space<vmem>>, vector<1x8x32xf32>
    %93 = vector.shape_cast %92 : vector<1x8x32xf32> to vector<8x32xf32>
    %cst_45 = arith.constant dense<0.000000e+00> : vector<16x32xf32>
    %94 = tpu.matmul %91, %93, %cst_45 {dimension_numbers = #tpu.dot_dimension_numbers<[1], [0], [0], [1], [0, 0, 1, 1], [], []>} : vector<16x8xf32>, vector<8x32xf32>, vector<16x32xf32> -> vector<16x32xf32>
    %95 = arith.addf %75, %94 : vector<16x32xf32>
    %c0_46 = arith.constant 0 : index
    %c0_47 = arith.constant 0 : index
    %96 = vector.load %arg9[%c0_46, %c0_47] : memref<1x32xf32, #tpu.memory_space<vmem>>, vector<1x32xf32>
    %97 = vector.broadcast %96 : vector<1x32xf32> to vector<16x32xf32>
    %98 = arith.addf %95, %97 : vector<16x32xf32>
    %99 = arith.addf %0, %98 : vector<16x32xf32>
    %cst_48 = arith.constant dense<0.000000e+00> : vector<16xf32>
    %100 = vector.multi_reduction <add>, %99, %cst_48 [1] : vector<16x32xf32> to vector<16xf32>
    %101 = vector.shape_cast %100 : vector<16xf32> to vector<16x1xf32>
    %cst_49 = arith.constant 3.200000e+01 : f32
    %102 = vector.broadcast %cst_49 : f32 to vector<16x1xf32>
    %103 = arith.divf %101, %102 : vector<16x1xf32>
    %104 = arith.mulf %99, %99 : vector<16x32xf32>
    %cst_50 = arith.constant dense<0.000000e+00> : vector<16xf32>
    %105 = vector.multi_reduction <add>, %104, %cst_50 [1] : vector<16x32xf32> to vector<16xf32>
    %106 = vector.shape_cast %105 : vector<16xf32> to vector<16x1xf32>
    %cst_51 = arith.constant 3.200000e+01 : f32
    %107 = vector.broadcast %cst_51 : f32 to vector<16x1xf32>
    %108 = arith.divf %106, %107 : vector<16x1xf32>
    %109 = arith.mulf %103, %103 : vector<16x1xf32>
    %110 = arith.subf %108, %109 : vector<16x1xf32>
    %111 = vector.broadcast %103 : vector<16x1xf32> to vector<16x32xf32>
    %112 = arith.subf %99, %111 : vector<16x32xf32>
    %cst_52 = arith.constant 9.99999974E-6 : f32
    %113 = vector.broadcast %cst_52 : f32 to vector<16x1xf32>
    %114 = arith.addf %110, %113 : vector<16x1xf32>
    %115 = math.rsqrt %114 : vector<16x1xf32>
    %116 = vector.broadcast %115 : vector<16x1xf32> to vector<16x32xf32>
    %117 = arith.mulf %112, %116 : vector<16x32xf32>
    %c0_53 = arith.constant 0 : index
    %c0_54 = arith.constant 0 : index
    %118 = vector.load %arg10[%c0_53, %c0_54] : memref<1x32xf32, #tpu.memory_space<vmem>>, vector<1x32xf32>
    %119 = vector.broadcast %118 : vector<1x32xf32> to vector<16x32xf32>
    %120 = arith.mulf %117, %119 : vector<16x32xf32>
    %c0_55 = arith.constant 0 : index
    %c0_56 = arith.constant 0 : index
    %121 = vector.load %arg11[%c0_55, %c0_56] : memref<1x32xf32, #tpu.memory_space<vmem>>, vector<1x32xf32>
    %122 = vector.broadcast %121 : vector<1x32xf32> to vector<16x32xf32>
    %123 = arith.addf %120, %122 : vector<16x32xf32>
    %c0_57 = arith.constant 0 : index
    %c0_58 = arith.constant 0 : index
    %124 = vector.load %arg12[%c0_57, %c0_58] : memref<32x64xf32, #tpu.memory_space<vmem>>, vector<32x64xf32>
    %cst_59 = arith.constant dense<0.000000e+00> : vector<16x64xf32>
    %125 = tpu.matmul %123, %124, %cst_59 {dimension_numbers = #tpu.dot_dimension_numbers<[1], [0], [0], [1], [0, 0, 1, 1], [], []>} : vector<16x32xf32>, vector<32x64xf32>, vector<16x64xf32> -> vector<16x64xf32>
    %c0_60 = arith.constant 0 : index
    %c0_61 = arith.constant 0 : index
    %126 = vector.load %arg13[%c0_60, %c0_61] : memref<1x64xf32, #tpu.memory_space<vmem>>, vector<1x64xf32>
    %127 = vector.broadcast %126 : vector<1x64xf32> to vector<16x64xf32>
    %128 = arith.addf %125, %127 : vector<16x64xf32>
    %cst_62 = arith.constant 0.000000e+00 : f32
    %129 = vector.broadcast %cst_62 : f32 to vector<16x64xf32>
    %130 = arith.cmpf oge, %128, %129 : vector<16x64xf32>
    %cst_63 = arith.constant 0.00999999977 : f32
    %131 = vector.broadcast %cst_63 : f32 to vector<16x64xf32>
    %132 = arith.mulf %131, %128 : vector<16x64xf32>
    %133 = arith.select %130, %128, %132 : vector<16x64xi1>, vector<16x64xf32>
    %c0_64 = arith.constant 0 : index
    %c0_65 = arith.constant 0 : index
    %134 = vector.load %arg14[%c0_64, %c0_65] : memref<64x32xf32, #tpu.memory_space<vmem>>, vector<64x32xf32>
    %cst_66 = arith.constant dense<0.000000e+00> : vector<16x32xf32>
    %135 = tpu.matmul %133, %134, %cst_66 {dimension_numbers = #tpu.dot_dimension_numbers<[1], [0], [0], [1], [0, 0, 1, 1], [], []>} : vector<16x64xf32>, vector<64x32xf32>, vector<16x32xf32> -> vector<16x32xf32>
    %c0_67 = arith.constant 0 : index
    %c0_68 = arith.constant 0 : index
    %136 = vector.load %arg15[%c0_67, %c0_68] : memref<1x32xf32, #tpu.memory_space<vmem>>, vector<1x32xf32>
    %137 = vector.broadcast %136 : vector<1x32xf32> to vector<16x32xf32>
    %138 = arith.addf %135, %137 : vector<16x32xf32>
    %139 = arith.addf %123, %138 : vector<16x32xf32>
    %cst_69 = arith.constant dense<0.000000e+00> : vector<16xf32>
    %140 = vector.multi_reduction <add>, %139, %cst_69 [1] : vector<16x32xf32> to vector<16xf32>
    %141 = vector.shape_cast %140 : vector<16xf32> to vector<16x1xf32>
    %cst_70 = arith.constant 3.200000e+01 : f32
    %142 = vector.broadcast %cst_70 : f32 to vector<16x1xf32>
    %143 = arith.divf %141, %142 : vector<16x1xf32>
    %144 = arith.mulf %139, %139 : vector<16x32xf32>
    %cst_71 = arith.constant dense<0.000000e+00> : vector<16xf32>
    %145 = vector.multi_reduction <add>, %144, %cst_71 [1] : vector<16x32xf32> to vector<16xf32>
    %146 = vector.shape_cast %145 : vector<16xf32> to vector<16x1xf32>
    %cst_72 = arith.constant 3.200000e+01 : f32
    %147 = vector.broadcast %cst_72 : f32 to vector<16x1xf32>
    %148 = arith.divf %146, %147 : vector<16x1xf32>
    %149 = arith.mulf %143, %143 : vector<16x1xf32>
    %150 = arith.subf %148, %149 : vector<16x1xf32>
    %151 = vector.broadcast %143 : vector<16x1xf32> to vector<16x32xf32>
    %152 = arith.subf %139, %151 : vector<16x32xf32>
    %cst_73 = arith.constant 9.99999974E-6 : f32
    %153 = vector.broadcast %cst_73 : f32 to vector<16x1xf32>
    %154 = arith.addf %150, %153 : vector<16x1xf32>
    %155 = math.rsqrt %154 : vector<16x1xf32>
    %156 = vector.broadcast %155 : vector<16x1xf32> to vector<16x32xf32>
    %157 = arith.mulf %152, %156 : vector<16x32xf32>
    %c0_74 = arith.constant 0 : index
    %c0_75 = arith.constant 0 : index
    %158 = vector.load %arg16[%c0_74, %c0_75] : memref<1x32xf32, #tpu.memory_space<vmem>>, vector<1x32xf32>
    %159 = vector.broadcast %158 : vector<1x32xf32> to vector<16x32xf32>
    %160 = arith.mulf %157, %159 : vector<16x32xf32>
    %c0_76 = arith.constant 0 : index
    %c0_77 = arith.constant 0 : index
    %161 = vector.load %arg17[%c0_76, %c0_77] : memref<1x32xf32, #tpu.memory_space<vmem>>, vector<1x32xf32>
    %162 = vector.broadcast %161 : vector<1x32xf32> to vector<16x32xf32>
    %163 = arith.addf %160, %162 : vector<16x32xf32>
    %c0_78 = arith.constant 0 : index
    %c0_79 = arith.constant 0 : index
    %164 = vector.load %arg18[%c0_78, %c0_79] : memref<16x32xf32, #tpu.memory_space<vmem>>, vector<16x32xf32>
    tpu.vector_store %arg18[%c0_78, %c0_79], %163 {strides = array<i32>} : memref<16x32xf32, #tpu.memory_space<vmem>>, vector<16x32xf32>,
    return
  }
}

</mosaic_0001>

<llo_original>
// kernel: tpu_custom_call.1
$region0: #{tpu_custom_call.1}
  #allocation0 [shape = 'u32[]', space=smem, size = 0x4, offset = 0x4, fixed_abs, tag = 'smem constant byte address 0x4 - core index']
  #allocation1 [shape = 'u32[144,128]{1,0:T(1,128)}', space=vmem, size = 0x12000, scoped, tag = 'internal scratch']
  %s0 = inlined_call_operand.hbm [shape: f32[16,32], index: 0, kind: input, shape index: {}]
  %s1 = inlined_call_operand.hbm [shape: f32[16,16], index: 1, kind: input, shape index: {}]
  %s2 = inlined_call_operand.vmem [shape: f32[32,32], index: 2, kind: input, shape index: {}]
  %s3 = inlined_call_operand.vmem [shape: f32[32,32], index: 3, kind: input, shape index: {}]
  %s4 = inlined_call_operand.vmem [shape: f32[32,32], index: 4, kind: input, shape index: {}]
  %s5 = inlined_call_operand.vmem [shape: f32[1,32], index: 5, kind: input, shape index: {}]
  %s6 = inlined_call_operand.vmem [shape: f32[1,32], index: 6, kind: input, shape index: {}]
  %s7 = inlined_call_operand.vmem [shape: f32[1,32], index: 7, kind: input, shape index: {}]
  %s8 = inlined_call_operand.hbm [shape: f32[4,8,32], index: 8, kind: input, shape index: {}]
  %s9 = inlined_call_operand.vmem [shape: f32[1,32], index: 9, kind: input, shape index: {}]
  %s10 = inlined_call_operand.vmem [shape: f32[1,32], index: 10, kind: input, shape index: {}]
  %s11 = inlined_call_operand.vmem [shape: f32[1,32], index: 11, kind: input, shape index: {}]
  %s12 = inlined_call_operand.hbm [shape: f32[32,64], index: 12, kind: input, shape index: {}]
  %s13 = inlined_call_operand.vmem [shape: f32[1,64], index: 13, kind: input, shape index: {}]
  %s14 = inlined_call_operand.vmem [shape: f32[64,32], index: 14, kind: input, shape index: {}]
  %s15 = inlined_call_operand.vmem [shape: f32[1,32], index: 15, kind: input, shape index: {}]
  %s16 = inlined_call_operand.vmem [shape: f32[1,32], index: 16, kind: input, shape index: {}]
  %s17 = inlined_call_operand.vmem [shape: f32[1,32], index: 17, kind: input, shape index: {}]
  %s18 = inlined_call_operand.hbm [shape: f32[16,32], index: 18, kind: output, shape index: {}]
  %s19 = sld [smem:[#allocation0]]
  $region98: #{tpu_custom_call.1} parent=0
    _
  %s21 = ssub.s32 1, %s19
  %s22 = scalar_select 0, %s21, %s19
  $region1: #{tpu_custom_call.1} parent=0
    #allocation2 [shape = 'u8[8192]{0}', space=vmem, size = 0x2000, scoped, tag = 'input window, operand 0, single buffered']
    #allocation3 [shape = 's32[1]{0}', space=sflag, size = 0x4, scoped, tag = 'scoped memory for tpu_custom_call.1']
    #allocation4 [shape = 's32[1]{0}', space=sflag, size = 0x4, scoped, tag = 'scoped memory for tpu_custom_call.1']
    #allocation5 [shape = 'u8[8192]{0}', space=vmem, size = 0x2000, scoped, tag = 'input window, operand 1, single buffered']
    #allocation6 [shape = 's32[1]{0}', space=sflag, size = 0x4, scoped, tag = 'scoped memory for tpu_custom_call.1']
    #allocation7 [shape = 'u8[16384]{0}', space=vmem, size = 0x4000, scoped, tag = 'input window, operand 8, single buffered']
    #allocation8 [shape = 'u8[16384]{0}', space=vmem, size = 0x4000, scoped, tag = 'input window, operand 12, single buffered']
    #allocation9 [shape = 's32[1]{0}', space=sflag, size = 0x4, scoped, tag = 'scoped memory for tpu_custom_call.1']
    #allocation10 [shape = 'u8[8192]{0}', space=vmem, size = 0x2000, scoped, tag = 'output window, operand 0, single buffered']
    %23 = vsyncpa [#allocation3], 0
    %24 = vsyncpa [#allocation6], 0
    %25 = vsyncpa [#allocation9], 0
    %26 = vsyncpa [#allocation4], 0
    // Predicated region
    $region2: #{tpu_custom_call.1} parent=1 // pred_check
      _
    $region3: #{tpu_custom_call.1} parent=1 // pred_check_branch
      %28 = sbr.rel (0) target = $region5
    $region4: #{tpu_custom_call.1} parent=1 // pred_region
      %s30 = ssub.s32 256, 256
      %31 = vsyncadd [#allocation3], %s30
      %s32 = sshll.u32 [#allocation2], 4
      %s33 = int_to_ptr.vmem [resolvable:$true] %s32
      %38 = dma.hbm_to_vmem [thread:$0]  %s0, 256, %s33, [#allocation3], 128, 128, 8
    $region5: #{tpu_custom_call.1} parent=1 // pred_fallthru
      _
    // Predicated region
    $region6: #{tpu_custom_call.1} parent=1 // pred_check
      _
    $region7: #{tpu_custom_call.1} parent=1 // pred_check_branch
      %40 = sbr.rel (0) target = $region9
    $region8: #{tpu_custom_call.1} parent=1 // pred_region
      %s42 = ssub.s32 256, 256
      %43 = vsyncadd [#allocation6], %s42
      %s44 = sshll.u32 [#allocation5], 4
      %s45 = int_to_ptr.vmem [resolvable:$true] %s44
      %50 = dma.hbm_to_vmem [thread:$0]  %s1, 256, %s45, [#allocation6], 128, 128, 8
    $region9: #{tpu_custom_call.1} parent=1 // pred_fallthru
      _
    // Predicated region
    $region10: #{tpu_custom_call.1} parent=1 // pred_check
      _
    $region11: #{tpu_custom_call.1} parent=1 // pred_check_branch
      %52 = sbr.rel (0) target = $region13
    $region12: #{tpu_custom_call.1} parent=1 // pred_region
      _
    $region13: #{tpu_custom_call.1} parent=1 // pred_fallthru
      _
    // Predicated region
    $region14: #{tpu_custom_call.1} parent=1 // pred_check
      _
    $region15: #{tpu_custom_call.1} parent=1 // pred_check_branch
      %54 = sbr.rel (0) target = $region17
    $region16: #{tpu_custom_call.1} parent=1 // pred_region
      _
    $region17: #{tpu_custom_call.1} parent=1 // pred_fallthru
      _
    // Predicated region
    $region18: #{tpu_custom_call.1} parent=1 // pred_check
      _
    $region19: #{tpu_custom_call.1} parent=1 // pred_check_branch
      %56 = sbr.rel (0) target = $region21
    $region20: #{tpu_custom_call.1} parent=1 // pred_region
      _
    $region21: #{tpu_custom_call.1} parent=1 // pred_fallthru
      _
    // Predicated region
    $region22: #{tpu_custom_call.1} parent=1 // pred_check
      _
    $region23: #{tpu_custom_call.1} parent=1 // pred_check_branch
      %58 = sbr.rel (0) target = $region25
    $region24: #{tpu_custom_call.1} parent=1 // pred_region
      _
    $region25: #{tpu_custom_call.1} parent=1 // pred_fallthru
      _
    // Predicated region
    $region26: #{tpu_custom_call.1} parent=1 // pred_check
      _
    $region27: #{tpu_custom_call.1} parent=1 // pred_check_branch
      %60 = sbr.rel (0) target = $region29
    $region28: #{tpu_custom_call.1} parent=1 // pred_region
      _
    $region29: #{tpu_custom_call.1} parent=1 // pred_fallthru
      _
    // Predicated region
    $region30: #{tpu_custom_call.1} parent=1 // pred_check
      _
    $region31: #{tpu_custom_call.1} parent=1 // pred_check_branch
      %62 = sbr.rel (0) target = $region33
    $region32: #{tpu_custom_call.1} parent=1 // pred_region
      _
    $region33: #{tpu_custom_call.1} parent=1 // pred_fallthru
      _
    // Predicated region
    $region34: #{tpu_custom_call.1} parent=1 // pred_check
      _
    $region35: #{tpu_custom_call.1} parent=1 // pred_check_branch
      %64 = sbr.rel (0) target = $region37
    $region36: #{tpu_custom_call.1} parent=1 // pred_region
      %s66 = ssub.s32 512, 512
      %67 = vsyncadd [#allocation6], %s66
      %s68 = sshll.u32 [#allocation7], 4
      %s69 = int_to_ptr.vmem [resolvable:$true] %s68
      %74 = dma.hbm_to_vmem [thread:$0]  %s8, 512, %s69, [#allocation6], 128, 128, 8
    $region37: #{tpu_custom_call.1} parent=1 // pred_fallthru
      _
    // Predicated region
    $region38: #{tpu_custom_call.1} parent=1 // pred_check
      _
    $region39: #{tpu_custom_call.1} parent=1 // pred_check_branch
      %76 = sbr.rel (0) target = $region41
    $region40: #{tpu_custom_call.1} parent=1 // pred_region
      _
    $region41: #{tpu_custom_call.1} parent=1 // pred_fallthru
      _
    // Predicated region
    $region42: #{tpu_custom_call.1} parent=1 // pred_check
      _
    $region43: #{tpu_custom_call.1} parent=1 // pred_check_branch
      %78 = sbr.rel (0) target = $region45
    $region44: #{tpu_custom_call.1} parent=1 // pred_region
      _
    $region45: #{tpu_custom_call.1} parent=1 // pred_fallthru
      _
    // Predicated region
    $region46: #{tpu_custom_call.1} parent=1 // pred_check
      _
    $region47: #{tpu_custom_call.1} parent=1 // pred_check_branch
      %80 = sbr.rel (0) target = $region49
    $region48: #{tpu_custom_call.1} parent=1 // pred_region
      _
    $region49: #{tpu_custom_call.1} parent=1 // pred_fallthru
      _
    // Predicated region
    $region50: #{tpu_custom_call.1} parent=1 // pred_check
      _
    $region51: #{tpu_custom_call.1} parent=1 // pred_check_branch
      %82 = sbr.rel (0) target = $region53
    $region52: #{tpu_custom_call.1} parent=1 // pred_region
      %s84 = ssub.s32 512, 512
      %85 = vsyncadd [#allocation9], %s84
      %s86 = sshll.u32 [#allocation8], 4
      %s87 = int_to_ptr.vmem [resolvable:$true] %s86
      %92 = dma.hbm_to_vmem [thread:$0]  %s12, 512, %s87, [#allocation9], 128, 128, 8
    $region53: #{tpu_custom_call.1} parent=1 // pred_fallthru
      _
    // Predicated region
    $region54: #{tpu_custom_call.1} parent=1 // pred_check
      _
    $region55: #{tpu_custom_call.1} parent=1 // pred_check_branch
      %94 = sbr.rel (0) target = $region57
    $region56: #{tpu_custom_call.1} parent=1 // pred_region
      _
    $region57: #{tpu_custom_call.1} parent=1 // pred_fallthru
      _
    // Predicated region
    $region58: #{tpu_custom_call.1} parent=1 // pred_check
      _
    $region59: #{tpu_custom_call.1} parent=1 // pred_check_branch
      %96 = sbr.rel (0) target = $region61
    $region60: #{tpu_custom_call.1} parent=1 // pred_region
      _
    $region61: #{tpu_custom_call.1} parent=1 // pred_fallthru
      _
    // Predicated region
    $region62: #{tpu_custom_call.1} parent=1 // pred_check
      _
    $region63: #{tpu_custom_call.1} parent=1 // pred_check_branch
      %98 = sbr.rel (0) target = $region65
    $region64: #{tpu_custom_call.1} parent=1 // pred_region
      _
    $region65: #{tpu_custom_call.1} parent=1 // pred_fallthru
      _
    // Predicated region
    $region66: #{tpu_custom_call.1} parent=1 // pred_check
      _
    $region67: #{tpu_custom_call.1} parent=1 // pred_check_branch
      %100 = sbr.rel (0) target = $region69
    $region68: #{tpu_custom_call.1} parent=1 // pred_region
      _
    $region69: #{tpu_custom_call.1} parent=1 // pred_fallthru
      _
    // Predicated region
    $region70: #{tpu_custom_call.1} parent=1 // pred_check
      _
    $region71: #{tpu_custom_call.1} parent=1 // pred_check_branch
      %102 = sbr.rel (0) target = $region73
    $region72: #{tpu_custom_call.1} parent=1 // pred_region
      _
    $region73: #{tpu_custom_call.1} parent=1 // pred_fallthru
      _
    // Predicated region
    $region74: #{tpu_custom_call.1} parent=1 // pred_check
      _
    $region75: #{tpu_custom_call.1} parent=1 // pred_check_branch
      %104 = sbr.rel (0) target = $region77
    $region76: #{tpu_custom_call.1} parent=1 // pred_region
      %105 = dma.done [#allocation3], 256
    $region77: #{tpu_custom_call.1} parent=1 // pred_fallthru
      _
    // Predicated region
    $region78: #{tpu_custom_call.1} parent=1 // pred_check
      _
    $region79: #{tpu_custom_call.1} parent=1 // pred_check_branch
      %107 = sbr.rel (0) target = $region81
    $region80: #{tpu_custom_call.1} parent=1 // pred_region
      %108 = dma.done [#allocation6], 256
    $region81: #{tpu_custom_call.1} parent=1 // pred_fallthru
      _
    // Predicated region
    $region82: #{tpu_custom_call.1} parent=1 // pred_check
      _
    $region83: #{tpu_custom_call.1} parent=1 // pred_check_branch
      %110 = sbr.rel (0) target = $region85
    $region84: #{tpu_custom_call.1} parent=1 // pred_region
      %111 = dma.done [#allocation6], 512
    $region85: #{tpu_custom_call.1} parent=1 // pred_fallthru
      _
    // Predicated region
    $region86: #{tpu_custom_call.1} parent=1 // pred_check
      _
    $region87: #{tpu_custom_call.1} parent=1 // pred_check_branch
      %113 = sbr.rel (0) target = $region89
    $region88: #{tpu_custom_call.1} parent=1 // pred_region
      %114 = dma.done [#allocation9], 512
    $region89: #{tpu_custom_call.1} parent=1 // pred_fallthru
      _
    %v115 = vld [vmem:[#allocation2] sm:$0xff]
    %v116 = vld [vmem:[#allocation2 + $0x8] sm:$0xff]
    %v117 = vld [vmem:[#allocation5] sm:$0xff]
    %v118 = vld [vmem:[#allocation5 + $0x8] sm:$0xff]
    %v119 = vld [vmem:[%s2] sm:$0xff]
    %v120 = vld [vmem:[%s2 + $0x8] sm:$0xff]
    %v121 = vld [vmem:[%s2 + $0x10] sm:$0xff]
    %v122 = vld [vmem:[%s2 + $0x18] sm:$0xff]
    %v123 = vld [vmem:[%s5] sm:$0x1]
    %v125 = vlaneseq
    %v126 = vshrl.u32 %v125, 7
    %v127 = vsub.s32 0, %v126
    %v128 = vrot.slane %v123, %v127
    %vm130 = vcmask 261120
    %v132 = vsel %vm130, %v115, 0
    %v135 = vsel %vm130, %v116, 0
    %137 = vmatprep.subr.mxu0 0.0
    %138 = vmatpush1.msra.mxu0 0.0
    %139 = vmatprep.subr.mxu0 0.0
    %140 = vmatpush1.msra.mxu0 0.0
    %141 = vmatprep.subr.mxu0 0.0
    %142 = vmatpush1.msra.mxu0 0.0
    %143 = vmatprep.subr.mxu0 0.0
    %144 = vmatpush1.msra.mxu0 0.0
    %145 = vmatprep.subr.mxu0 0.0
    %146 = vmatpush1.msra.mxu0 0.0
    %147 = vmatprep.subr.mxu0 0.0
    %148 = vmatpush1.msra.mxu0 0.0
    %149 = vmatprep.subr.mxu0 0.0
    %150 = vmatpush1.msra.mxu0 0.0
    %151 = vmatprep.subr.mxu0 0.0
    %152 = vmatpush1.msra.mxu0 0.0
    %153 = vmatprep.subr.mxu0 0.0
    %154 = vmatpush1.msra.mxu0 0.0
    %155 = vmatprep.subr.mxu0 0.0
    %156 = vmatpush1.msra.mxu0 0.0
    %157 = vmatprep.subr.mxu0 0.0
    %158 = vmatpush1.msra.mxu0 0.0
    %159 = vmatprep.subr.mxu0 0.0
    %160 = vmatpush1.msra.mxu0 0.0
    %161 = vmatprep.subr.mxu0 0.0
    %162 = vmatpush1.msra.mxu0 %v122
    %163 = vmatprep.subr.mxu0 0.0
    %164 = vmatpush1.msra.mxu0 %v121
    %165 = vmatprep.subr.mxu0 0.0
    %166 = vmatpush1.msra.mxu0 %v120
    %167 = vmatprep.subr.mxu0 0.0
    %168 = vmatpush1.msra.mxu0 %v119
    %169 = vmatprep.subr.mxu0 0.0
    %170 = vmatpush2.msra.mxu0 0.0
    %171 = vmatprep.subr.mxu0 0.0
    %172 = vmatpush2.msra.mxu0 0.0
    %173 = vmatprep.subr.mxu0 0.0
    %174 = vmatpush2.msra.mxu0 0.0
    %175 = vmatprep.subr.mxu0 0.0
    %176 = vmatpush2.msra.mxu0 0.0
    %177 = vmatprep.subr.mxu0 0.0
    %178 = vmatpush2.msra.mxu0 0.0
    %179 = vmatprep.subr.mxu0 0.0
    %180 = vmatpush2.msra.mxu0 0.0
    %181 = vmatprep.subr.mxu0 0.0
    %182 = vmatpush2.msra.mxu0 0.0
    %183 = vmatprep.subr.mxu0 0.0
    %184 = vmatpush2.msra.mxu0 0.0
    %185 = vmatprep.subr.mxu0 0.0
    %186 = vmatpush2.msra.mxu0 0.0
    %187 = vmatprep.subr.mxu0 0.0
    %188 = vmatpush2.msra.mxu0 0.0
    %189 = vmatprep.subr.mxu0 0.0
    %190 = vmatpush2.msra.mxu0 0.0
    %191 = vmatprep.subr.mxu0 0.0
    %192 = vmatpush2.msra.mxu0 0.0
    %193 = vmatprep.subr.mxu0 0.0
    %194 = vmatpush2.msra.mxu0 0.0
    %195 = vmatprep.subr.mxu0 0.0
    %196 = vmatpush2.msra.mxu0 0.0
    %197 = vmatprep.subr.mxu0 0.0
    %198 = vmatpush2.msra.mxu0 0.0
    %199 = vmatprep.subr.mxu0 0.0
    %200 = vmatpush2.msra.mxu0 0.0
    %201 = vmatprep.mubr.f32.mxu0 0.0
    %202 = vmatmul.mubr.f32.gmra.mxu0 %v132
    %v203 = vpop.f32.mrf.mxu0
    %v204 = vadd.f32 %v128, %v203
    %v205 = vpop.f32.mrf.mxu0
    %206 = vmatprep.mubr.f32.mxu0 0.0
    %207 = vmatmul.mubr.f32.gmra.mxu0 %v135
    %v208 = vpop.f32.mrf.mxu0
    %v209 = vadd.f32 %v128, %v208
    %v210 = vpop.f32.mrf.mxu0
    %211 = vdwg.mxu0
    %v212 = vld [vmem:[%s3] sm:$0xff]
    %v213 = vld [vmem:[%s3 + $0x8] sm:$0xff]
    %v214 = vld [vmem:[%s3 + $0x10] sm:$0xff]
    %v215 = vld [vmem:[%s3 + $0x18] sm:$0xff]
    %v216 = vld [vmem:[%s6] sm:$0x1]
    %v218 = vlaneseq
    %v219 = vshrl.u32 %v218, 7
    %v220 = vsub.s32 0, %v219
    %v221 = vrot.slane %v216, %v220
    %223 = vmatprep.subr.mxu0 0.0
    %224 = vmatpush1.msra.mxu0 0.0
    %225 = vmatprep.subr.mxu0 0.0
    %226 = vmatpush1.msra.mxu0 0.0
    %227 = vmatprep.subr.mxu0 0.0
    %228 = vmatpush1.msra.mxu0 0.0
    %229 = vmatprep.subr.mxu0 0.0
    %230 = vmatpush1.msra.mxu0 0.0
    %231 = vmatprep.subr.mxu0 0.0
    %232 = vmatpush1.msra.mxu0 0.0
    %233 = vmatprep.subr.mxu0 0.0
    %234 = vmatpush1.msra.mxu0 0.0
    %235 = vmatprep.subr.mxu0 0.0
    %236 = vmatpush1.msra.mxu0 0.0
    %237 = vmatprep.subr.mxu0 0.0
    %238 = vmatpush1.msra.mxu0 0.0
    %239 = vmatprep.subr.mxu0 0.0
    %240 = vmatpush1.msra.mxu0 0.0
    %241 = vmatprep.subr.mxu0 0.0
    %242 = vmatpush1.msra.mxu0 0.0
    %243 = vmatprep.subr.mxu0 0.0
    %244 = vmatpush1.msra.mxu0 0.0
    %245 = vmatprep.subr.mxu0 0.0
    %246 = vmatpush1.msra.mxu0 0.0
    %247 = vmatprep.subr.mxu0 0.0
    %248 = vmatpush1.msra.mxu0 %v215
    %249 = vmatprep.subr.mxu0 0.0
    %250 = vmatpush1.msra.mxu0 %v214
    %251 = vmatprep.subr.mxu0 0.0
    %252 = vmatpush1.msra.mxu0 %v213
    %253 = vmatprep.subr.mxu0 0.0
    %254 = vmatpush1.msra.mxu0 %v212
    %255 = vmatprep.subr.mxu0 0.0
    %256 = vmatpush2.msra.mxu0 0.0
    %257 = vmatprep.subr.mxu0 0.0
    %258 = vmatpush2.msra.mxu0 0.0
    %259 = vmatprep.subr.mxu0 0.0
    %260 = vmatpush2.msra.mxu0 0.0
    %261 = vmatprep.subr.mxu0 0.0
    %262 = vmatpush2.msra.mxu0 0.0
    %263 = vmatprep.subr.mxu0 0.0
    %264 = vmatpush2.msra.mxu0 0.0
    %265 = vmatprep.subr.mxu0 0.0
    %266 = vmatpush2.msra.mxu0 0.0
    %267 = vmatprep.subr.mxu0 0.0
    %268 = vmatpush2.msra.mxu0 0.0
    %269 = vmatprep.subr.mxu0 0.0
    %270 = vmatpush2.msra.mxu0 0.0
    %271 = vmatprep.subr.mxu0 0.0
    %272 = vmatpush2.msra.mxu0 0.0
    %273 = vmatprep.subr.mxu0 0.0
    %274 = vmatpush2.msra.mxu0 0.0
    %275 = vmatprep.subr.mxu0 0.0
    %276 = vmatpush2.msra.mxu0 0.0
    %277 = vmatprep.subr.mxu0 0.0
    %278 = vmatpush2.msra.mxu0 0.0
    %279 = vmatprep.subr.mxu0 0.0
    %280 = vmatpush2.msra.mxu0 0.0
    %281 = vmatprep.subr.mxu0 0.0
    %282 = vmatpush2.msra.mxu0 0.0
    %283 = vmatprep.subr.mxu0 0.0
    %284 = vmatpush2.msra.mxu0 0.0
    %285 = vmatprep.subr.mxu0 0.0
    %286 = vmatpush2.msra.mxu0 0.0
    %287 = vmatprep.mubr.f32.mxu0 0.0
    %288 = vmatmul.mubr.f32.gmra.mxu0 %v132
    %v289 = vpop.f32.mrf.mxu0
    %v290 = vadd.f32 %v221, %v289
    %v291 = vpop.f32.mrf.mxu0
    %292 = vmatprep.mubr.f32.mxu0 0.0
    %293 = vmatmul.mubr.f32.gmra.mxu0 %v135
    %v294 = vpop.f32.mrf.mxu0
    %v295 = vadd.f32 %v221, %v294
    %v296 = vpop.f32.mrf.mxu0
    %297 = vdwg.mxu0
    %v298 = vld [vmem:[%s4] sm:$0xff]
    %v299 = vld [vmem:[%s4 + $0x8] sm:$0xff]
    %v300 = vld [vmem:[%s4 + $0x10] sm:$0xff]
    %v301 = vld [vmem:[%s4 + $0x18] sm:$0xff]
    %v302 = vld [vmem:[%s7] sm:$0x1]
    %v304 = vlaneseq
    %v305 = vshrl.u32 %v304, 7
    %v306 = vsub.s32 0, %v305
    %v307 = vrot.slane %v302, %v306
    %309 = vmatprep.subr.mxu0 0.0
    %310 = vmatpush1.msra.mxu0 0.0
    %311 = vmatprep.subr.mxu0 0.0
    %312 = vmatpush1.msra.mxu0 0.0
    %313 = vmatprep.subr.mxu0 0.0
    %314 = vmatpush1.msra.mxu0 0.0
    %315 = vmatprep.subr.mxu0 0.0
    %316 = vmatpush1.msra.mxu0 0.0
    %317 = vmatprep.subr.mxu0 0.0
    %318 = vmatpush1.msra.mxu0 0.0
    %319 = vmatprep.subr.mxu0 0.0
    %320 = vmatpush1.msra.mxu0 0.0
    %321 = vmatprep.subr.mxu0 0.0
    %322 = vmatpush1.msra.mxu0 0.0
    %323 = vmatprep.subr.mxu0 0.0
    %324 = vmatpush1.msra.mxu0 0.0
    %325 = vmatprep.subr.mxu0 0.0
    %326 = vmatpush1.msra.mxu0 0.0
    %327 = vmatprep.subr.mxu0 0.0
    %328 = vmatpush1.msra.mxu0 0.0
    %329 = vmatprep.subr.mxu0 0.0
    %330 = vmatpush1.msra.mxu0 0.0
    %331 = vmatprep.subr.mxu0 0.0
    %332 = vmatpush1.msra.mxu0 0.0
    %333 = vmatprep.subr.mxu0 0.0
    %334 = vmatpush1.msra.mxu0 %v301
    %335 = vmatprep.subr.mxu0 0.0
    %336 = vmatpush1.msra.mxu0 %v300
    %337 = vmatprep.subr.mxu0 0.0
    %338 = vmatpush1.msra.mxu0 %v299
    %339 = vmatprep.subr.mxu0 0.0
    %340 = vmatpush1.msra.mxu0 %v298
    %341 = vmatprep.subr.mxu0 0.0
    %342 = vmatpush2.msra.mxu0 0.0
    %343 = vmatprep.subr.mxu0 0.0
    %344 = vmatpush2.msra.mxu0 0.0
    %345 = vmatprep.subr.mxu0 0.0
    %346 = vmatpush2.msra.mxu0 0.0
    %347 = vmatprep.subr.mxu0 0.0
    %348 = vmatpush2.msra.mxu0 0.0
    %349 = vmatprep.subr.mxu0 0.0
    %350 = vmatpush2.msra.mxu0 0.0
    %351 = vmatprep.subr.mxu0 0.0
    %352 = vmatpush2.msra.mxu0 0.0
    %353 = vmatprep.subr.mxu0 0.0
    %354 = vmatpush2.msra.mxu0 0.0
    %355 = vmatprep.subr.mxu0 0.0
    %356 = vmatpush2.msra.mxu0 0.0
    %357 = vmatprep.subr.mxu0 0.0
    %358 = vmatpush2.msra.mxu0 0.0
    %359 = vmatprep.subr.mxu0 0.0
    %360 = vmatpush2.msra.mxu0 0.0
    %361 = vmatprep.subr.mxu0 0.0
    %362 = vmatpush2.msra.mxu0 0.0
    %363 = vmatprep.subr.mxu0 0.0
    %364 = vmatpush2.msra.mxu0 0.0
    %365 = vmatprep.subr.mxu0 0.0
    %366 = vmatpush2.msra.mxu0 0.0
    %367 = vmatprep.subr.mxu0 0.0
    %368 = vmatpush2.msra.mxu0 0.0
    %369 = vmatprep.subr.mxu0 0.0
    %370 = vmatpush2.msra.mxu0 0.0
    %371 = vmatprep.subr.mxu0 0.0
    %372 = vmatpush2.msra.mxu0 0.0
    %373 = vmatprep.mubr.f32.mxu0 0.0
    %374 = vmatmul.mubr.f32.gmra.mxu0 %v132
    %v375 = vpop.f32.mrf.mxu0
    %v376 = vadd.f32 %v307, %v375
    %v377 = vpop.f32.mrf.mxu0
    %378 = vmatprep.mubr.f32.mxu0 0.0
    %379 = vmatmul.mubr.f32.gmra.mxu0 %v135
    %v380 = vpop.f32.mrf.mxu0
    %v381 = vadd.f32 %v307, %v380
    %v382 = vpop.f32.mrf.mxu0
    %383 = vdwg.mxu0
    %vm384 = vcmask 64512
    %v386 = vsel %vm384, %v204, 0
    %v389 = vsel %vm384, %v209, 0
    %v392 = vsel %vm384, %v290, 0
    %v395 = vsel %vm384, %v295, 0
    %397 = vmatprep.subr.mxu0 0.0
    %398 = vmatpush1.xpose.msra.mxu0 0.0
    %399 = vmatprep.subr.mxu0 0.0
    %400 = vmatpush1.xpose.msra.mxu0 0.0
    %401 = vmatprep.subr.mxu0 0.0
    %402 = vmatpush1.xpose.msra.mxu0 0.0
    %403 = vmatprep.subr.mxu0 0.0
    %404 = vmatpush1.xpose.msra.mxu0 0.0
    %405 = vmatprep.subr.mxu0 0.0
    %406 = vmatpush1.xpose.msra.mxu0 0.0
    %407 = vmatprep.subr.mxu0 0.0
    %408 = vmatpush1.xpose.msra.mxu0 0.0
    %409 = vmatprep.subr.mxu0 0.0
    %410 = vmatpush1.xpose.msra.mxu0 0.0
    %411 = vmatprep.subr.mxu0 0.0
    %412 = vmatpush1.xpose.msra.mxu0 0.0
    %413 = vmatprep.subr.mxu0 0.0
    %414 = vmatpush1.xpose.msra.mxu0 0.0
    %415 = vmatprep.subr.mxu0 0.0
    %416 = vmatpush1.xpose.msra.mxu0 0.0
    %417 = vmatprep.subr.mxu0 0.0
    %418 = vmatpush1.xpose.msra.mxu0 0.0
    %419 = vmatprep.subr.mxu0 0.0
    %420 = vmatpush1.xpose.msra.mxu0 0.0
    %421 = vmatprep.subr.mxu0 0.0
    %422 = vmatpush1.xpose.msra.mxu0 0.0
    %423 = vmatprep.subr.mxu0 0.0
    %424 = vmatpush1.xpose.msra.mxu0 0.0
    %425 = vmatprep.subr.mxu0 0.0
    %426 = vmatpush1.xpose.msra.mxu0 %v395
    %427 = vmatprep.subr.mxu0 0.0
    %428 = vmatpush1.xpose.msra.mxu0 %v392
    %429 = vmatprep.subr.mxu0 0.0
    %430 = vmatpush2.xpose.msra.mxu0 0.0
    %431 = vmatprep.subr.mxu0 0.0
    %432 = vmatpush2.xpose.msra.mxu0 0.0
    %433 = vmatprep.subr.mxu0 0.0
    %434 = vmatpush2.xpose.msra.mxu0 0.0
    %435 = vmatprep.subr.mxu0 0.0
    %436 = vmatpush2.xpose.msra.mxu0 0.0
    %437 = vmatprep.subr.mxu0 0.0
    %438 = vmatpush2.xpose.msra.mxu0 0.0
    %439 = vmatprep.subr.mxu0 0.0
    %440 = vmatpush2.xpose.msra.mxu0 0.0
    %441 = vmatprep.subr.mxu0 0.0
    %442 = vmatpush2.xpose.msra.mxu0 0.0
    %443 = vmatprep.subr.mxu0 0.0
    %444 = vmatpush2.xpose.msra.mxu0 0.0
    %445 = vmatprep.subr.mxu0 0.0
    %446 = vmatpush2.xpose.msra.mxu0 0.0
    %447 = vmatprep.subr.mxu0 0.0
    %448 = vmatpush2.xpose.msra.mxu0 0.0
    %449 = vmatprep.subr.mxu0 0.0
    %450 = vmatpush2.xpose.msra.mxu0 0.0
    %451 = vmatprep.subr.mxu0 0.0
    %452 = vmatpush2.xpose.msra.mxu0 0.0
    %453 = vmatprep.subr.mxu0 0.0
    %454 = vmatpush2.xpose.msra.mxu0 0.0
    %455 = vmatprep.subr.mxu0 0.0
    %456 = vmatpush2.xpose.msra.mxu0 0.0
    %457 = vmatprep.subr.mxu0 0.0
    %458 = vmatpush2.xpose.msra.mxu0 0.0
    %459 = vmatprep.subr.mxu0 0.0
    %460 = vmatpush2.xpose.msra.mxu0 0.0
    %461 = vmatprep.mubr.f32.mxu0 0.0
    %462 = vmatmul.mubr.f32.gmra.mxu0 %v386
    %v463 = vpop.f32.mrf.mxu0
    %v464 = vadd.f32 %v117, %v463
    %v465 = vpop.f32.mrf.mxu0
    %466 = vmatprep.mubr.f32.mxu0 0.0
    %467 = vmatmul.mubr.f32.gmra.mxu0 %v389
    %v468 = vpop.f32.mrf.mxu0
    %v469 = vadd.f32 %v118, %v468
    %v470 = vpop.f32.mrf.mxu0
    %471 = vdwg.mxu0
    %vm472 = vcmask 130048
    %v473 = vsel %vm472, %v464, -inf
    %474 = vmax.xlane.f32.xlu0 %v473
    %v475 = vpop.xlane.xlu0 %474
    %v476 = vsel %vm472, %v469, -inf
    %477 = vmax.xlane.f32.xlu0 %v476
    %v478 = vpop.xlane.xlu0 %477
    %v479 = vsub.f32 %v464, %v475
    %v480 = vsub.f32 %v469, %v478
    %v481 = vmul.f32 %v479, 1.442695
    %v482 = vpow.pop %v481
    %v483 = vmul.f32 %v480, 1.442695
    %v484 = vpow.pop %v483
    %v485 = vsel %vm472, %v482, 0.0
    %486 = vadd.xlane.f32.xlu0 %v485
    %v487 = vpop.xlane.xlu0 %486
    %v488 = vsel %vm472, %v484, 0.0
    %489 = vadd.xlane.f32.xlu0 %v488
    %v490 = vpop.xlane.xlu0 %489
    %v491 = vrcp.pop %v487
    %v492 = vrcp.pop %v490
    %v493 = vmul.f32 %v482, %v491
    %v494 = vmul.f32 %v484, %v492
    %v496 = vsel %vm472, %v493, 0
    %v499 = vsel %vm472, %v494, 0
    %501 = vmatprep.subr.mxu0 0.0
    %502 = vmatpush1.msra.mxu0 0.0
    %503 = vmatprep.subr.mxu0 0.0
    %504 = vmatpush1.msra.mxu0 0.0
    %505 = vmatprep.subr.mxu0 0.0
    %506 = vmatpush1.msra.mxu0 0.0
    %507 = vmatprep.subr.mxu0 0.0
    %508 = vmatpush1.msra.mxu0 0.0
    %509 = vmatprep.subr.mxu0 0.0
    %510 = vmatpush1.msra.mxu0 0.0
    %511 = vmatprep.subr.mxu0 0.0
    %512 = vmatpush1.msra.mxu0 0.0
    %513 = vmatprep.subr.mxu0 0.0
    %514 = vmatpush1.msra.mxu0 0.0
    %515 = vmatprep.subr.mxu0 0.0
    %516 = vmatpush1.msra.mxu0 0.0
    %517 = vmatprep.subr.mxu0 0.0
    %518 = vmatpush1.msra.mxu0 0.0
    %519 = vmatprep.subr.mxu0 0.0
    %520 = vmatpush1.msra.mxu0 0.0
    %521 = vmatprep.subr.mxu0 0.0
    %522 = vmatpush1.msra.mxu0 0.0
    %523 = vmatprep.subr.mxu0 0.0
    %524 = vmatpush1.msra.mxu0 0.0
    %525 = vmatprep.subr.mxu0 0.0
    %526 = vmatpush1.msra.mxu0 0.0
    %527 = vmatprep.subr.mxu0 0.0
    %528 = vmatpush1.msra.mxu0 0.0
    %529 = vmatprep.subr.mxu0 0.0
    %530 = vmatpush1.msra.mxu0 %v381
    %531 = vmatprep.subr.mxu0 0.0
    %532 = vmatpush1.msra.mxu0 %v376
    %533 = vmatprep.subr.mxu0 0.0
    %534 = vmatpush2.msra.mxu0 0.0
    %535 = vmatprep.subr.mxu0 0.0
    %536 = vmatpush2.msra.mxu0 0.0
    %537 = vmatprep.subr.mxu0 0.0
    %538 = vmatpush2.msra.mxu0 0.0
    %539 = vmatprep.subr.mxu0 0.0
    %540 = vmatpush2.msra.mxu0 0.0
    %541 = vmatprep.subr.mxu0 0.0
    %542 = vmatpush2.msra.mxu0 0.0
    %543 = vmatprep.subr.mxu0 0.0
    %544 = vmatpush2.msra.mxu0 0.0
    %545 = vmatprep.subr.mxu0 0.0
    %546 = vmatpush2.msra.mxu0 0.0
    %547 = vmatprep.subr.mxu0 0.0
    %548 = vmatpush2.msra.mxu0 0.0
    %549 = vmatprep.subr.mxu0 0.0
    %550 = vmatpush2.msra.mxu0 0.0
    %551 = vmatprep.subr.mxu0 0.0
    %552 = vmatpush2.msra.mxu0 0.0
    %553 = vmatprep.subr.mxu0 0.0
    %554 = vmatpush2.msra.mxu0 0.0
    %555 = vmatprep.subr.mxu0 0.0
    %556 = vmatpush2.msra.mxu0 0.0
    %557 = vmatprep.subr.mxu0 0.0
    %558 = vmatpush2.msra.mxu0 0.0
    %559 = vmatprep.subr.mxu0 0.0
    %560 = vmatpush2.msra.mxu0 0.0
    %561 = vmatprep.subr.mxu0 0.0
    %562 = vmatpush2.msra.mxu0 0.0
    %563 = vmatprep.subr.mxu0 0.0
    %564 = vmatpush2.msra.mxu0 0.0
    %565 = vmatprep.mubr.f32.mxu0 0.0
    %566 = vmatmul.mubr.f32.gmra.mxu0 %v496
    %v567 = vpop.f32.mrf.mxu0
    %v568 = vadd.f32 0.0, %v567
    %v569 = vpop.f32.mrf.mxu0
    %570 = vmatprep.mubr.f32.mxu0 0.0
    %571 = vmatmul.mubr.f32.gmra.mxu0 %v499
    %v572 = vpop.f32.mrf.mxu0
    %v573 = vadd.f32 0.0, %v572
    %v574 = vpop.f32.mrf.mxu0
    %575 = vdwg.mxu0
    %v576 = vld [vmem:[#allocation7] sm:$0xff]
    %577 = vrot.lane.b32.xlu0 %v204, 120
    %v578 = vpop.permute.xlu0 %577
    %579 = vrot.lane.b32.xlu0 %v209, 120
    %v580 = vpop.permute.xlu0 %579
    %581 = vrot.lane.b32.xlu0 %v290, 120
    %v582 = vpop.permute.xlu0 %581
    %583 = vrot.lane.b32.xlu0 %v295, 120
    %v584 = vpop.permute.xlu0 %583
    %v585 = vsel %vm384, %v578, 0
    %v587 = vsel %vm384, %v580, 0
    %v589 = vsel %vm384, %v582, 0
    %v591 = vsel %vm384, %v584, 0
    %593 = vmatprep.subr.mxu0 0.0
    %594 = vmatpush1.xpose.msra.mxu0 0.0
    %595 = vmatprep.subr.mxu0 0.0
    %596 = vmatpush1.xpose.msra.mxu0 0.0
    %597 = vmatprep.subr.mxu0 0.0
    %598 = vmatpush1.xpose.msra.mxu0 0.0
    %599 = vmatprep.subr.mxu0 0.0
    %600 = vmatpush1.xpose.msra.mxu0 0.0
    %601 = vmatprep.subr.mxu0 0.0
    %602 = vmatpush1.xpose.msra.mxu0 0.0
    %603 = vmatprep.subr.mxu0 0.0
    %604 = vmatpush1.xpose.msra.mxu0 0.0
    %605 = vmatprep.subr.mxu0 0.0
    %606 = vmatpush1.xpose.msra.mxu0 0.0
    %607 = vmatprep.subr.mxu0 0.0
    %608 = vmatpush1.xpose.msra.mxu0 0.0
    %609 = vmatprep.subr.mxu0 0.0
    %610 = vmatpush1.xpose.msra.mxu0 0.0
    %611 = vmatprep.subr.mxu0 0.0
    %612 = vmatpush1.xpose.msra.mxu0 0.0
    %613 = vmatprep.subr.mxu0 0.0
    %614 = vmatpush1.xpose.msra.mxu0 0.0
    %615 = vmatprep.subr.mxu0 0.0
    %616 = vmatpush1.xpose.msra.mxu0 0.0
    %617 = vmatprep.subr.mxu0 0.0
    %618 = vmatpush1.xpose.msra.mxu0 0.0
    %619 = vmatprep.subr.mxu0 0.0
    %620 = vmatpush1.xpose.msra.mxu0 0.0
    %621 = vmatprep.subr.mxu0 0.0
    %622 = vmatpush1.xpose.msra.mxu0 %v591
    %623 = vmatprep.subr.mxu0 0.0
    %624 = vmatpush1.xpose.msra.mxu0 %v589
    %625 = vmatprep.subr.mxu0 0.0
    %626 = vmatpush2.xpose.msra.mxu0 0.0
    %627 = vmatprep.subr.mxu0 0.0
    %628 = vmatpush2.xpose.msra.mxu0 0.0
    %629 = vmatprep.subr.mxu0 0.0
    %630 = vmatpush2.xpose.msra.mxu0 0.0
    %631 = vmatprep.subr.mxu0 0.0
    %632 = vmatpush2.xpose.msra.mxu0 0.0
    %633 = vmatprep.subr.mxu0 0.0
    %634 = vmatpush2.xpose.msra.mxu0 0.0
    %635 = vmatprep.subr.mxu0 0.0
    %636 = vmatpush2.xpose.msra.mxu0 0.0
    %637 = vmatprep.subr.mxu0 0.0
    %638 = vmatpush2.xpose.msra.mxu0 0.0
    %639 = vmatprep.subr.mxu0 0.0
    %640 = vmatpush2.xpose.msra.mxu0 0.0
    %641 = vmatprep.subr.mxu0 0.0
    %642 = vmatpush2.xpose.msra.mxu0 0.0
    %643 = vmatprep.subr.mxu0 0.0
    %644 = vmatpush2.xpose.msra.mxu0 0.0
    %645 = vmatprep.subr.mxu0 0.0
    %646 = vmatpush2.xpose.msra.mxu0 0.0
    %647 = vmatprep.subr.mxu0 0.0
    %648 = vmatpush2.xpose.msra.mxu0 0.0
    %649 = vmatprep.subr.mxu0 0.0
    %650 = vmatpush2.xpose.msra.mxu0 0.0
    %651 = vmatprep.subr.mxu0 0.0
    %652 = vmatpush2.xpose.msra.mxu0 0.0
    %653 = vmatprep.subr.mxu0 0.0
    %654 = vmatpush2.xpose.msra.mxu0 0.0
    %655 = vmatprep.subr.mxu0 0.0
    %656 = vmatpush2.xpose.msra.mxu0 0.0
    %657 = vmatprep.mubr.f32.mxu0 0.0
    %658 = vmatmul.mubr.f32.gmra.mxu0 %v585
    %v659 = vpop.f32.mrf.mxu0
    %v660 = vadd.f32 %v117, %v659
    %v661 = vpop.f32.mrf.mxu0
    %662 = vmatprep.mubr.f32.mxu0 0.0
    %663 = vmatmul.mubr.f32.gmra.mxu0 %v587
    %v664 = vpop.f32.mrf.mxu0
    %v665 = vadd.f32 %v118, %v664
    %v666 = vpop.f32.mrf.mxu0
    %667 = vdwg.mxu0
    %v668 = vsel %vm472, %v660, -inf
    %669 = vmax.xlane.f32.xlu0 %v668
    %v670 = vpop.xlane.xlu0 %669
    %v671 = vsel %vm472, %v665, -inf
    %672 = vmax.xlane.f32.xlu0 %v671
    %v673 = vpop.xlane.xlu0 %672
    %v674 = vsub.f32 %v660, %v670
    %v675 = vsub.f32 %v665, %v673
    %v676 = vmul.f32 %v674, 1.442695
    %v677 = vpow.pop %v676
    %v678 = vmul.f32 %v675, 1.442695
    %v679 = vpow.pop %v678
    %v680 = vsel %vm472, %v677, 0.0
    %681 = vadd.xlane.f32.xlu0 %v680
    %v682 = vpop.xlane.xlu0 %681
    %v683 = vsel %vm472, %v679, 0.0
    %684 = vadd.xlane.f32.xlu0 %v683
    %v685 = vpop.xlane.xlu0 %684
    %v686 = vrcp.pop %v682
    %v687 = vrcp.pop %v685
    %v688 = vmul.f32 %v677, %v686
    %v689 = vmul.f32 %v679, %v687
    %692 = vrot.lane.b32.xlu0 %v376, 120
    %v693 = vpop.permute.xlu0 %692
    %694 = vrot.lane.b32.xlu0 %v381, 120
    %v695 = vpop.permute.xlu0 %694
    %v699 = vsel %vm472, %v688, 0
    %v702 = vsel %vm472, %v689, 0
    %704 = vmatprep.subr.mxu0 0.0
    %705 = vmatpush1.msra.mxu0 0.0
    %706 = vmatprep.subr.mxu0 0.0
    %707 = vmatpush1.msra.mxu0 0.0
    %708 = vmatprep.subr.mxu0 0.0
    %709 = vmatpush1.msra.mxu0 0.0
    %710 = vmatprep.subr.mxu0 0.0
    %711 = vmatpush1.msra.mxu0 0.0
    %712 = vmatprep.subr.mxu0 0.0
    %713 = vmatpush1.msra.mxu0 0.0
    %714 = vmatprep.subr.mxu0 0.0
    %715 = vmatpush1.msra.mxu0 0.0
    %716 = vmatprep.subr.mxu0 0.0
    %717 = vmatpush1.msra.mxu0 0.0
    %718 = vmatprep.subr.mxu0 0.0
    %719 = vmatpush1.msra.mxu0 0.0
    %720 = vmatprep.subr.mxu0 0.0
    %721 = vmatpush1.msra.mxu0 0.0
    %722 = vmatprep.subr.mxu0 0.0
    %723 = vmatpush1.msra.mxu0 0.0
    %724 = vmatprep.subr.mxu0 0.0
    %725 = vmatpush1.msra.mxu0 0.0
    %726 = vmatprep.subr.mxu0 0.0
    %727 = vmatpush1.msra.mxu0 0.0
    %728 = vmatprep.subr.mxu0 0.0
    %729 = vmatpush1.msra.mxu0 0.0
    %730 = vmatprep.subr.mxu0 0.0
    %731 = vmatpush1.msra.mxu0 0.0
    %732 = vmatprep.subr.mxu0 0.0
    %733 = vmatpush1.msra.mxu0 %v695
    %734 = vmatprep.subr.mxu0 0.0
    %735 = vmatpush1.msra.mxu0 %v693
    %736 = vmatprep.subr.mxu0 0.0
    %737 = vmatpush2.msra.mxu0 0.0
    %738 = vmatprep.subr.mxu0 0.0
    %739 = vmatpush2.msra.mxu0 0.0
    %740 = vmatprep.subr.mxu0 0.0
    %741 = vmatpush2.msra.mxu0 0.0
    %742 = vmatprep.subr.mxu0 0.0
    %743 = vmatpush2.msra.mxu0 0.0
    %744 = vmatprep.subr.mxu0 0.0
    %745 = vmatpush2.msra.mxu0 0.0
    %746 = vmatprep.subr.mxu0 0.0
    %747 = vmatpush2.msra.mxu0 0.0
    %748 = vmatprep.subr.mxu0 0.0
    %749 = vmatpush2.msra.mxu0 0.0
    %750 = vmatprep.subr.mxu0 0.0
    %751 = vmatpush2.msra.mxu0 0.0
    %752 = vmatprep.subr.mxu0 0.0
    %753 = vmatpush2.msra.mxu0 0.0
    %754 = vmatprep.subr.mxu0 0.0
    %755 = vmatpush2.msra.mxu0 0.0
    %756 = vmatprep.subr.mxu0 0.0
    %757 = vmatpush2.msra.mxu0 0.0
    %758 = vmatprep.subr.mxu0 0.0
    %759 = vmatpush2.msra.mxu0 0.0
    %760 = vmatprep.subr.mxu0 0.0
    %761 = vmatpush2.msra.mxu0 0.0
    %762 = vmatprep.subr.mxu0 0.0
    %763 = vmatpush2.msra.mxu0 0.0
    %764 = vmatprep.subr.mxu0 0.0
    %765 = vmatpush2.msra.mxu0 0.0
    %766 = vmatprep.subr.mxu0 0.0
    %767 = vmatpush2.msra.mxu0 0.0
    %768 = vmatprep.mubr.f32.mxu0 0.0
    %769 = vmatmul.mubr.f32.gmra.mxu0 %v699
    %v770 = vpop.f32.mrf.mxu0
    %v771 = vadd.f32 0.0, %v770
    %v772 = vpop.f32.mrf.mxu0
    %773 = vmatprep.mubr.f32.mxu0 0.0
    %774 = vmatmul.mubr.f32.gmra.mxu0 %v702
    %v775 = vpop.f32.mrf.mxu0
    %v776 = vadd.f32 0.0, %v775
    %v777 = vpop.f32.mrf.mxu0
    %778 = vdwg.mxu0
    %s779 = scalar_lea.vmem [#allocation7], 8
    %v780 = vld [vmem:[%s779] sm:$0xff]
    %v782 = vsel %vm384, %v771, 0
    %v785 = vsel %vm384, %v776, 0
    %787 = vmatprep.subr.mxu0 0.0
    %788 = vmatpush1.msra.mxu0 0.0
    %789 = vmatprep.subr.mxu0 0.0
    %790 = vmatpush1.msra.mxu0 0.0
    %791 = vmatprep.subr.mxu0 0.0
    %792 = vmatpush1.msra.mxu0 0.0
    %793 = vmatprep.subr.mxu0 0.0
    %794 = vmatpush1.msra.mxu0 0.0
    %795 = vmatprep.subr.mxu0 0.0
    %796 = vmatpush1.msra.mxu0 0.0
    %797 = vmatprep.subr.mxu0 0.0
    %798 = vmatpush1.msra.mxu0 0.0
    %799 = vmatprep.subr.mxu0 0.0
    %800 = vmatpush1.msra.mxu0 0.0
    %801 = vmatprep.subr.mxu0 0.0
    %802 = vmatpush1.msra.mxu0 0.0
    %803 = vmatprep.subr.mxu0 0.0
    %804 = vmatpush1.msra.mxu0 0.0
    %805 = vmatprep.subr.mxu0 0.0
    %806 = vmatpush1.msra.mxu0 0.0
    %807 = vmatprep.subr.mxu0 0.0
    %808 = vmatpush1.msra.mxu0 0.0
    %809 = vmatprep.subr.mxu0 0.0
    %810 = vmatpush1.msra.mxu0 0.0
    %811 = vmatprep.subr.mxu0 0.0
    %812 = vmatpush1.msra.mxu0 0.0
    %813 = vmatprep.subr.mxu0 0.0
    %814 = vmatpush1.msra.mxu0 0.0
    %815 = vmatprep.subr.mxu0 0.0
    %816 = vmatpush1.msra.mxu0 0.0
    %817 = vmatprep.subr.mxu0 0.0
    %818 = vmatpush1.msra.mxu0 %v780
    %819 = vmatprep.subr.mxu0 0.0
    %820 = vmatpush2.msra.mxu0 0.0
    %821 = vmatprep.subr.mxu0 0.0
    %822 = vmatpush2.msra.mxu0 0.0
    %823 = vmatprep.subr.mxu0 0.0
    %824 = vmatpush2.msra.mxu0 0.0
    %825 = vmatprep.subr.mxu0 0.0
    %826 = vmatpush2.msra.mxu0 0.0
    %827 = vmatprep.subr.mxu0 0.0
    %828 = vmatpush2.msra.mxu0 0.0
    %829 = vmatprep.subr.mxu0 0.0
    %830 = vmatpush2.msra.mxu0 0.0
    %831 = vmatprep.subr.mxu0 0.0
    %832 = vmatpush2.msra.mxu0 0.0
    %833 = vmatprep.subr.mxu0 0.0
    %834 = vmatpush2.msra.mxu0 0.0
    %835 = vmatprep.subr.mxu0 0.0
    %836 = vmatpush2.msra.mxu0 0.0
    %837 = vmatprep.subr.mxu0 0.0
    %838 = vmatpush2.msra.mxu0 0.0
    %839 = vmatprep.subr.mxu0 0.0
    %840 = vmatpush2.msra.mxu0 0.0
    %841 = vmatprep.subr.mxu0 0.0
    %842 = vmatpush2.msra.mxu0 0.0
    %843 = vmatprep.subr.mxu0 0.0
    %844 = vmatpush2.msra.mxu0 0.0
    %845 = vmatprep.subr.mxu0 0.0
    %846 = vmatpush2.msra.mxu0 0.0
    %847 = vmatprep.subr.mxu0 0.0
    %848 = vmatpush2.msra.mxu0 0.0
    %849 = vmatprep.subr.mxu0 0.0
    %850 = vmatpush2.msra.mxu0 0.0
    %851 = vmatprep.mubr.f32.mxu0 0.0
    %852 = vmatmul.mubr.f32.gmra.mxu0 %v782
    %v853 = vpop.f32.mrf.mxu0
    %v854 = vadd.f32 0.0, %v853
    %v855 = vpop.f32.mrf.mxu0
    %856 = vmatprep.mubr.f32.mxu0 0.0
    %857 = vmatmul.mubr.f32.gmra.mxu0 %v785
    %v858 = vpop.f32.mrf.mxu0
    %v859 = vadd.f32 0.0, %v858
    %v860 = vpop.f32.mrf.mxu0
    %861 = vdwg.mxu0
    %v863 = vsel %vm384, %v568, 0
    %v866 = vsel %vm384, %v573, 0
    %868 = vmatprep.subr.mxu0 0.0
    %869 = vmatpush1.msra.mxu0 0.0
    %870 = vmatprep.subr.mxu0 0.0
    %871 = vmatpush1.msra.mxu0 0.0
    %872 = vmatprep.subr.mxu0 0.0
    %873 = vmatpush1.msra.mxu0 0.0
    %874 = vmatprep.subr.mxu0 0.0
    %875 = vmatpush1.msra.mxu0 0.0
    %876 = vmatprep.subr.mxu0 0.0
    %877 = vmatpush1.msra.mxu0 0.0
    %878 = vmatprep.subr.mxu0 0.0
    %879 = vmatpush1.msra.mxu0 0.0
    %880 = vmatprep.subr.mxu0 0.0
    %881 = vmatpush1.msra.mxu0 0.0
    %882 = vmatprep.subr.mxu0 0.0
    %883 = vmatpush1.msra.mxu0 0.0
    %884 = vmatprep.subr.mxu0 0.0
    %885 = vmatpush1.msra.mxu0 0.0
    %886 = vmatprep.subr.mxu0 0.0
    %887 = vmatpush1.msra.mxu0 0.0
    %888 = vmatprep.subr.mxu0 0.0
    %889 = vmatpush1.msra.mxu0 0.0
    %890 = vmatprep.subr.mxu0 0.0
    %891 = vmatpush1.msra.mxu0 0.0
    %892 = vmatprep.subr.mxu0 0.0
    %893 = vmatpush1.msra.mxu0 0.0
    %894 = vmatprep.subr.mxu0 0.0
    %895 = vmatpush1.msra.mxu0 0.0
    %896 = vmatprep.subr.mxu0 0.0
    %897 = vmatpush1.msra.mxu0 0.0
    %898 = vmatprep.subr.mxu0 0.0
    %899 = vmatpush1.msra.mxu0 %v576
    %900 = vmatprep.subr.mxu0 0.0
    %901 = vmatpush2.msra.mxu0 0.0
    %902 = vmatprep.subr.mxu0 0.0
    %903 = vmatpush2.msra.mxu0 0.0
    %904 = vmatprep.subr.mxu0 0.0
    %905 = vmatpush2.msra.mxu0 0.0
    %906 = vmatprep.subr.mxu0 0.0
    %907 = vmatpush2.msra.mxu0 0.0
    %908 = vmatprep.subr.mxu0 0.0
    %909 = vmatpush2.msra.mxu0 0.0
    %910 = vmatprep.subr.mxu0 0.0
    %911 = vmatpush2.msra.mxu0 0.0
    %912 = vmatprep.subr.mxu0 0.0
    %913 = vmatpush2.msra.mxu0 0.0
    %914 = vmatprep.subr.mxu0 0.0
    %915 = vmatpush2.msra.mxu0 0.0
    %916 = vmatprep.subr.mxu0 0.0
    %917 = vmatpush2.msra.mxu0 0.0
    %918 = vmatprep.subr.mxu0 0.0
    %919 = vmatpush2.msra.mxu0 0.0
    %920 = vmatprep.subr.mxu0 0.0
    %921 = vmatpush2.msra.mxu0 0.0
    %922 = vmatprep.subr.mxu0 0.0
    %923 = vmatpush2.msra.mxu0 0.0
    %924 = vmatprep.subr.mxu0 0.0
    %925 = vmatpush2.msra.mxu0 0.0
    %926 = vmatprep.subr.mxu0 0.0
    %927 = vmatpush2.msra.mxu0 0.0
    %928 = vmatprep.subr.mxu0 0.0
    %929 = vmatpush2.msra.mxu0 0.0
    %930 = vmatprep.subr.mxu0 0.0
    %931 = vmatpush2.msra.mxu0 0.0
    %932 = vmatprep.mubr.f32.mxu0 0.0
    %933 = vmatmul.mubr.f32.gmra.mxu0 %v863
    %v934 = vpop.f32.mrf.mxu0
    %v935 = vadd.f32 %v854, %v934
    %v936 = vpop.f32.mrf.mxu0
    %937 = vmatprep.mubr.f32.mxu0 0.0
    %938 = vmatmul.mubr.f32.gmra.mxu0 %v866
    %v939 = vpop.f32.mrf.mxu0
    %v940 = vadd.f32 %v859, %v939
    %v941 = vpop.f32.mrf.mxu0
    %942 = vdwg.mxu0
    %943 = vrot.lane.b32.xlu0 %v204, 112
    %v944 = vpop.permute.xlu0 %943
    %945 = vrot.lane.b32.xlu0 %v209, 112
    %v946 = vpop.permute.xlu0 %945
    %947 = vrot.lane.b32.xlu0 %v290, 112
    %v948 = vpop.permute.xlu0 %947
    %949 = vrot.lane.b32.xlu0 %v295, 112
    %v950 = vpop.permute.xlu0 %949
    %v951 = vsel %vm384, %v944, 0
    %v953 = vsel %vm384, %v946, 0
    %v955 = vsel %vm384, %v948, 0
    %v957 = vsel %vm384, %v950, 0
    %959 = vmatprep.subr.mxu0 0.0
    %960 = vmatpush1.xpose.msra.mxu0 0.0
    %961 = vmatprep.subr.mxu0 0.0
    %962 = vmatpush1.xpose.msra.mxu0 0.0
    %963 = vmatprep.subr.mxu0 0.0
    %964 = vmatpush1.xpose.msra.mxu0 0.0
    %965 = vmatprep.subr.mxu0 0.0
    %966 = vmatpush1.xpose.msra.mxu0 0.0
    %967 = vmatprep.subr.mxu0 0.0
    %968 = vmatpush1.xpose.msra.mxu0 0.0
    %969 = vmatprep.subr.mxu0 0.0
    %970 = vmatpush1.xpose.msra.mxu0 0.0
    %971 = vmatprep.subr.mxu0 0.0
    %972 = vmatpush1.xpose.msra.mxu0 0.0
    %973 = vmatprep.subr.mxu0 0.0
    %974 = vmatpush1.xpose.msra.mxu0 0.0
    %975 = vmatprep.subr.mxu0 0.0
    %976 = vmatpush1.xpose.msra.mxu0 0.0
    %977 = vmatprep.subr.mxu0 0.0
    %978 = vmatpush1.xpose.msra.mxu0 0.0
    %979 = vmatprep.subr.mxu0 0.0
    %980 = vmatpush1.xpose.msra.mxu0 0.0
    %981 = vmatprep.subr.mxu0 0.0
    %982 = vmatpush1.xpose.msra.mxu0 0.0
    %983 = vmatprep.subr.mxu0 0.0
    %984 = vmatpush1.xpose.msra.mxu0 0.0
    %985 = vmatprep.subr.mxu0 0.0
    %986 = vmatpush1.xpose.msra.mxu0 0.0
    %987 = vmatprep.subr.mxu0 0.0
    %988 = vmatpush1.xpose.msra.mxu0 %v957
    %989 = vmatprep.subr.mxu0 0.0
    %990 = vmatpush1.xpose.msra.mxu0 %v955
    %991 = vmatprep.subr.mxu0 0.0
    %992 = vmatpush2.xpose.msra.mxu0 0.0
    %993 = vmatprep.subr.mxu0 0.0
    %994 = vmatpush2.xpose.msra.mxu0 0.0
    %995 = vmatprep.subr.mxu0 0.0
    %996 = vmatpush2.xpose.msra.mxu0 0.0
    %997 = vmatprep.subr.mxu0 0.0
    %998 = vmatpush2.xpose.msra.mxu0 0.0
    %999 = vmatprep.subr.mxu0 0.0
    %1000 = vmatpush2.xpose.msra.mxu0 0.0
    %1001 = vmatprep.subr.mxu0 0.0
    %1002 = vmatpush2.xpose.msra.mxu0 0.0
    %1003 = vmatprep.subr.mxu0 0.0
    %1004 = vmatpush2.xpose.msra.mxu0 0.0
    %1005 = vmatprep.subr.mxu0 0.0
    %1006 = vmatpush2.xpose.msra.mxu0 0.0
    %1007 = vmatprep.subr.mxu0 0.0
    %1008 = vmatpush2.xpose.msra.mxu0 0.0
    %1009 = vmatprep.subr.mxu0 0.0
    %1010 = vmatpush2.xpose.msra.mxu0 0.0
    %1011 = vmatprep.subr.mxu0 0.0
    %1012 = vmatpush2.xpose.msra.mxu0 0.0
    %1013 = vmatprep.subr.mxu0 0.0
    %1014 = vmatpush2.xpose.msra.mxu0 0.0
    %1015 = vmatprep.subr.mxu0 0.0
    %1016 = vmatpush2.xpose.msra.mxu0 0.0
    %1017 = vmatprep.subr.mxu0 0.0
    %1018 = vmatpush2.xpose.msra.mxu0 0.0
    %1019 = vmatprep.subr.mxu0 0.0
    %1020 = vmatpush2.xpose.msra.mxu0 0.0
    %1021 = vmatprep.subr.mxu0 0.0
    %1022 = vmatpush2.xpose.msra.mxu0 0.0
    %1023 = vmatprep.mubr.f32.mxu0 0.0
    %1024 = vmatmul.mubr.f32.gmra.mxu0 %v951
    %v1025 = vpop.f32.mrf.mxu0
    %v1026 = vadd.f32 %v117, %v1025
    %v1027 = vpop.f32.mrf.mxu0
    %1028 = vmatprep.mubr.f32.mxu0 0.0
    %1029 = vmatmul.mubr.f32.gmra.mxu0 %v953
    %v1030 = vpop.f32.mrf.mxu0
    %v1031 = vadd.f32 %v118, %v1030
    %v1032 = vpop.f32.mrf.mxu0
    %1033 = vdwg.mxu0
    %v1034 = vsel %vm472, %v1026, -inf
    %1035 = vmax.xlane.f32.xlu0 %v1034
    %v1036 = vpop.xlane.xlu0 %1035
    %v1037 = vsel %vm472, %v1031, -inf
    %1038 = vmax.xlane.f32.xlu0 %v1037
    %v1039 = vpop.xlane.xlu0 %1038
    %v1040 = vsub.f32 %v1026, %v1036
    %v1041 = vsub.f32 %v1031, %v1039
    %v1042 = vmul.f32 %v1040, 1.442695
    %v1043 = vpow.pop %v1042
    %v1044 = vmul.f32 %v1041, 1.442695
    %v1045 = vpow.pop %v1044
    %v1046 = vsel %vm472, %v1043, 0.0
    %1047 = vadd.xlane.f32.xlu0 %v1046
    %v1048 = vpop.xlane.xlu0 %1047
    %v1049 = vsel %vm472, %v1045, 0.0
    %1050 = vadd.xlane.f32.xlu0 %v1049
    %v1051 = vpop.xlane.xlu0 %1050
    %v1052 = vrcp.pop %v1048
    %v1053 = vrcp.pop %v1051
    %v1054 = vmul.f32 %v1043, %v1052
    %v1055 = vmul.f32 %v1045, %v1053
    %1056 = vrot.lane.b32.xlu0 %v376, 112
    %v1057 = vpop.permute.xlu0 %1056
    %1058 = vrot.lane.b32.xlu0 %v381, 112
    %v1059 = vpop.permute.xlu0 %1058
    %v1063 = vsel %vm472, %v1054, 0
    %v1066 = vsel %vm472, %v1055, 0
    %1068 = vmatprep.subr.mxu0 0.0
    %1069 = vmatpush1.msra.mxu0 0.0
    %1070 = vmatprep.subr.mxu0 0.0
    %1071 = vmatpush1.msra.mxu0 0.0
    %1072 = vmatprep.subr.mxu0 0.0
    %1073 = vmatpush1.msra.mxu0 0.0
    %1074 = vmatprep.subr.mxu0 0.0
    %1075 = vmatpush1.msra.mxu0 0.0
    %1076 = vmatprep.subr.mxu0 0.0
    %1077 = vmatpush1.msra.mxu0 0.0
    %1078 = vmatprep.subr.mxu0 0.0
    %1079 = vmatpush1.msra.mxu0 0.0
    %1080 = vmatprep.subr.mxu0 0.0
    %1081 = vmatpush1.msra.mxu0 0.0
    %1082 = vmatprep.subr.mxu0 0.0
    %1083 = vmatpush1.msra.mxu0 0.0
    %1084 = vmatprep.subr.mxu0 0.0
    %1085 = vmatpush1.msra.mxu0 0.0
    %1086 = vmatprep.subr.mxu0 0.0
    %1087 = vmatpush1.msra.mxu0 0.0
    %1088 = vmatprep.subr.mxu0 0.0
    %1089 = vmatpush1.msra.mxu0 0.0
    %1090 = vmatprep.subr.mxu0 0.0
    %1091 = vmatpush1.msra.mxu0 0.0
    %1092 = vmatprep.subr.mxu0 0.0
    %1093 = vmatpush1.msra.mxu0 0.0
    %1094 = vmatprep.subr.mxu0 0.0
    %1095 = vmatpush1.msra.mxu0 0.0
    %1096 = vmatprep.subr.mxu0 0.0
    %1097 = vmatpush1.msra.mxu0 %v1059
    %1098 = vmatprep.subr.mxu0 0.0
    %1099 = vmatpush1.msra.mxu0 %v1057
    %1100 = vmatprep.subr.mxu0 0.0
    %1101 = vmatpush2.msra.mxu0 0.0
    %1102 = vmatprep.subr.mxu0 0.0
    %1103 = vmatpush2.msra.mxu0 0.0
    %1104 = vmatprep.subr.mxu0 0.0
    %1105 = vmatpush2.msra.mxu0 0.0
    %1106 = vmatprep.subr.mxu0 0.0
    %1107 = vmatpush2.msra.mxu0 0.0
    %1108 = vmatprep.subr.mxu0 0.0
    %1109 = vmatpush2.msra.mxu0 0.0
    %1110 = vmatprep.subr.mxu0 0.0
    %1111 = vmatpush2.msra.mxu0 0.0
    %1112 = vmatprep.subr.mxu0 0.0
    %1113 = vmatpush2.msra.mxu0 0.0
    %1114 = vmatprep.subr.mxu0 0.0
    %1115 = vmatpush2.msra.mxu0 0.0
    %1116 = vmatprep.subr.mxu0 0.0
    %1117 = vmatpush2.msra.mxu0 0.0
    %1118 = vmatprep.subr.mxu0 0.0
    %1119 = vmatpush2.msra.mxu0 0.0
    %1120 = vmatprep.subr.mxu0 0.0
    %1121 = vmatpush2.msra.mxu0 0.0
    %1122 = vmatprep.subr.mxu0 0.0
    %1123 = vmatpush2.msra.mxu0 0.0
    %1124 = vmatprep.subr.mxu0 0.0
    %1125 = vmatpush2.msra.mxu0 0.0
    %1126 = vmatprep.subr.mxu0 0.0
    %1127 = vmatpush2.msra.mxu0 0.0
    %1128 = vmatprep.subr.mxu0 0.0
    %1129 = vmatpush2.msra.mxu0 0.0
    %1130 = vmatprep.subr.mxu0 0.0
    %1131 = vmatpush2.msra.mxu0 0.0
    %1132 = vmatprep.mubr.f32.mxu0 0.0
    %1133 = vmatmul.mubr.f32.gmra.mxu0 %v1063
    %v1134 = vpop.f32.mrf.mxu0
    %v1135 = vadd.f32 0.0, %v1134
    %v1136 = vpop.f32.mrf.mxu0
    %1137 = vmatprep.mubr.f32.mxu0 0.0
    %1138 = vmatmul.mubr.f32.gmra.mxu0 %v1066
    %v1139 = vpop.f32.mrf.mxu0
    %v1140 = vadd.f32 0.0, %v1139
    %v1141 = vpop.f32.mrf.mxu0
    %1142 = vdwg.mxu0
    %s1143 = scalar_lea.vmem [#allocation7], 16
    %v1144 = vld [vmem:[%s1143] sm:$0xff]
    %v1146 = vsel %vm384, %v1135, 0
    %v1149 = vsel %vm384, %v1140, 0
    %1151 = vmatprep.subr.mxu0 0.0
    %1152 = vmatpush1.msra.mxu0 0.0
    %1153 = vmatprep.subr.mxu0 0.0
    %1154 = vmatpush1.msra.mxu0 0.0
    %1155 = vmatprep.subr.mxu0 0.0
    %1156 = vmatpush1.msra.mxu0 0.0
    %1157 = vmatprep.subr.mxu0 0.0
    %1158 = vmatpush1.msra.mxu0 0.0
    %1159 = vmatprep.subr.mxu0 0.0
    %1160 = vmatpush1.msra.mxu0 0.0
    %1161 = vmatprep.subr.mxu0 0.0
    %1162 = vmatpush1.msra.mxu0 0.0
    %1163 = vmatprep.subr.mxu0 0.0
    %1164 = vmatpush1.msra.mxu0 0.0
    %1165 = vmatprep.subr.mxu0 0.0
    %1166 = vmatpush1.msra.mxu0 0.0
    %1167 = vmatprep.subr.mxu0 0.0
    %1168 = vmatpush1.msra.mxu0 0.0
    %1169 = vmatprep.subr.mxu0 0.0
    %1170 = vmatpush1.msra.mxu0 0.0
    %1171 = vmatprep.subr.mxu0 0.0
    %1172 = vmatpush1.msra.mxu0 0.0
    %1173 = vmatprep.subr.mxu0 0.0
    %1174 = vmatpush1.msra.mxu0 0.0
    %1175 = vmatprep.subr.mxu0 0.0
    %1176 = vmatpush1.msra.mxu0 0.0
    %1177 = vmatprep.subr.mxu0 0.0
    %1178 = vmatpush1.msra.mxu0 0.0
    %1179 = vmatprep.subr.mxu0 0.0
    %1180 = vmatpush1.msra.mxu0 0.0
    %1181 = vmatprep.subr.mxu0 0.0
    %1182 = vmatpush1.msra.mxu0 %v1144
    %1183 = vmatprep.subr.mxu0 0.0
    %1184 = vmatpush2.msra.mxu0 0.0
    %1185 = vmatprep.subr.mxu0 0.0
    %1186 = vmatpush2.msra.mxu0 0.0
    %1187 = vmatprep.subr.mxu0 0.0
    %1188 = vmatpush2.msra.mxu0 0.0
    %1189 = vmatprep.subr.mxu0 0.0
    %1190 = vmatpush2.msra.mxu0 0.0
    %1191 = vmatprep.subr.mxu0 0.0
    %1192 = vmatpush2.msra.mxu0 0.0
    %1193 = vmatprep.subr.mxu0 0.0
    %1194 = vmatpush2.msra.mxu0 0.0
    %1195 = vmatprep.subr.mxu0 0.0
    %1196 = vmatpush2.msra.mxu0 0.0
    %1197 = vmatprep.subr.mxu0 0.0
    %1198 = vmatpush2.msra.mxu0 0.0
    %1199 = vmatprep.subr.mxu0 0.0
    %1200 = vmatpush2.msra.mxu0 0.0
    %1201 = vmatprep.subr.mxu0 0.0
    %1202 = vmatpush2.msra.mxu0 0.0
    %1203 = vmatprep.subr.mxu0 0.0
    %1204 = vmatpush2.msra.mxu0 0.0
    %1205 = vmatprep.subr.mxu0 0.0
    %1206 = vmatpush2.msra.mxu0 0.0
    %1207 = vmatprep.subr.mxu0 0.0
    %1208 = vmatpush2.msra.mxu0 0.0
    %1209 = vmatprep.subr.mxu0 0.0
    %1210 = vmatpush2.msra.mxu0 0.0
    %1211 = vmatprep.subr.mxu0 0.0
    %1212 = vmatpush2.msra.mxu0 0.0
    %1213 = vmatprep.subr.mxu0 0.0
    %1214 = vmatpush2.msra.mxu0 0.0
    %1215 = vmatprep.mubr.f32.mxu0 0.0
    %1216 = vmatmul.mubr.f32.gmra.mxu0 %v1146
    %v1217 = vpop.f32.mrf.mxu0
    %v1218 = vadd.f32 0.0, %v1217
    %v1219 = vpop.f32.mrf.mxu0
    %1220 = vmatprep.mubr.f32.mxu0 0.0
    %1221 = vmatmul.mubr.f32.gmra.mxu0 %v1149
    %v1222 = vpop.f32.mrf.mxu0
    %v1223 = vadd.f32 0.0, %v1222
    %v1224 = vpop.f32.mrf.mxu0
    %1225 = vdwg.mxu0
    %v1226 = vadd.f32 %v935, %v1218
    %v1227 = vadd.f32 %v940, %v1223
    %1228 = vrot.lane.b32.xlu0 %v204, 104
    %v1229 = vpop.permute.xlu0 %1228
    %1230 = vrot.lane.b32.xlu0 %v209, 104
    %v1231 = vpop.permute.xlu0 %1230
    %1232 = vrot.lane.b32.xlu0 %v290, 104
    %v1233 = vpop.permute.xlu0 %1232
    %1234 = vrot.lane.b32.xlu0 %v295, 104
    %v1235 = vpop.permute.xlu0 %1234
    %v1236 = vsel %vm384, %v1229, 0
    %v1238 = vsel %vm384, %v1231, 0
    %v1240 = vsel %vm384, %v1233, 0
    %v1242 = vsel %vm384, %v1235, 0
    %1244 = vmatprep.subr.mxu0 0.0
    %1245 = vmatpush1.xpose.msra.mxu0 0.0
    %1246 = vmatprep.subr.mxu0 0.0
    %1247 = vmatpush1.xpose.msra.mxu0 0.0
    %1248 = vmatprep.subr.mxu0 0.0
    %1249 = vmatpush1.xpose.msra.mxu0 0.0
    %1250 = vmatprep.subr.mxu0 0.0
    %1251 = vmatpush1.xpose.msra.mxu0 0.0
    %1252 = vmatprep.subr.mxu0 0.0
    %1253 = vmatpush1.xpose.msra.mxu0 0.0
    %1254 = vmatprep.subr.mxu0 0.0
    %1255 = vmatpush1.xpose.msra.mxu0 0.0
    %1256 = vmatprep.subr.mxu0 0.0
    %1257 = vmatpush1.xpose.msra.mxu0 0.0
    %1258 = vmatprep.subr.mxu0 0.0
    %1259 = vmatpush1.xpose.msra.mxu0 0.0
    %1260 = vmatprep.subr.mxu0 0.0
    %1261 = vmatpush1.xpose.msra.mxu0 0.0
    %1262 = vmatprep.subr.mxu0 0.0
    %1263 = vmatpush1.xpose.msra.mxu0 0.0
    %1264 = vmatprep.subr.mxu0 0.0
    %1265 = vmatpush1.xpose.msra.mxu0 0.0
    %1266 = vmatprep.subr.mxu0 0.0
    %1267 = vmatpush1.xpose.msra.mxu0 0.0
    %1268 = vmatprep.subr.mxu0 0.0
    %1269 = vmatpush1.xpose.msra.mxu0 0.0
    %1270 = vmatprep.subr.mxu0 0.0
    %1271 = vmatpush1.xpose.msra.mxu0 0.0
    %1272 = vmatprep.subr.mxu0 0.0
    %1273 = vmatpush1.xpose.msra.mxu0 %v1242
    %1274 = vmatprep.subr.mxu0 0.0
    %1275 = vmatpush1.xpose.msra.mxu0 %v1240
    %1276 = vmatprep.subr.mxu0 0.0
    %1277 = vmatpush2.xpose.msra.mxu0 0.0
    %1278 = vmatprep.subr.mxu0 0.0
    %1279 = vmatpush2.xpose.msra.mxu0 0.0
    %1280 = vmatprep.subr.mxu0 0.0
    %1281 = vmatpush2.xpose.msra.mxu0 0.0
    %1282 = vmatprep.subr.mxu0 0.0
    %1283 = vmatpush2.xpose.msra.mxu0 0.0
    %1284 = vmatprep.subr.mxu0 0.0
    %1285 = vmatpush2.xpose.msra.mxu0 0.0
    %1286 = vmatprep.subr.mxu0 0.0
    %1287 = vmatpush2.xpose.msra.mxu0 0.0
    %1288 = vmatprep.subr.mxu0 0.0
    %1289 = vmatpush2.xpose.msra.mxu0 0.0
    %1290 = vmatprep.subr.mxu0 0.0
    %1291 = vmatpush2.xpose.msra.mxu0 0.0
    %1292 = vmatprep.subr.mxu0 0.0
    %1293 = vmatpush2.xpose.msra.mxu0 0.0
    %1294 = vmatprep.subr.mxu0 0.0
    %1295 = vmatpush2.xpose.msra.mxu0 0.0
    %1296 = vmatprep.subr.mxu0 0.0
    %1297 = vmatpush2.xpose.msra.mxu0 0.0
    %1298 = vmatprep.subr.mxu0 0.0
    %1299 = vmatpush2.xpose.msra.mxu0 0.0
    %1300 = vmatprep.subr.mxu0 0.0
    %1301 = vmatpush2.xpose.msra.mxu0 0.0
    %1302 = vmatprep.subr.mxu0 0.0
    %1303 = vmatpush2.xpose.msra.mxu0 0.0
    %1304 = vmatprep.subr.mxu0 0.0
    %1305 = vmatpush2.xpose.msra.mxu0 0.0
    %1306 = vmatprep.subr.mxu0 0.0
    %1307 = vmatpush2.xpose.msra.mxu0 0.0
    %1308 = vmatprep.mubr.f32.mxu0 0.0
    %1309 = vmatmul.mubr.f32.gmra.mxu0 %v1236
    %v1310 = vpop.f32.mrf.mxu0
    %v1311 = vadd.f32 %v117, %v1310
    %v1312 = vpop.f32.mrf.mxu0
    %1313 = vmatprep.mubr.f32.mxu0 0.0
    %1314 = vmatmul.mubr.f32.gmra.mxu0 %v1238
    %v1315 = vpop.f32.mrf.mxu0
    %v1316 = vadd.f32 %v118, %v1315
    %v1317 = vpop.f32.mrf.mxu0
    %1318 = vdwg.mxu0
    %v1319 = vsel %vm472, %v1311, -inf
    %1320 = vmax.xlane.f32.xlu0 %v1319
    %v1321 = vpop.xlane.xlu0 %1320
    %v1322 = vsel %vm472, %v1316, -inf
    %1323 = vmax.xlane.f32.xlu0 %v1322
    %v1324 = vpop.xlane.xlu0 %1323
    %v1325 = vsub.f32 %v1311, %v1321
    %v1326 = vsub.f32 %v1316, %v1324
    %v1327 = vmul.f32 %v1325, 1.442695
    %v1328 = vpow.pop %v1327
    %v1329 = vmul.f32 %v1326, 1.442695
    %v1330 = vpow.pop %v1329
    %v1331 = vsel %vm472, %v1328, 0.0
    %1332 = vadd.xlane.f32.xlu0 %v1331
    %v1333 = vpop.xlane.xlu0 %1332
    %v1334 = vsel %vm472, %v1330, 0.0
    %1335 = vadd.xlane.f32.xlu0 %v1334
    %v1336 = vpop.xlane.xlu0 %1335
    %v1337 = vrcp.pop %v1333
    %v1338 = vrcp.pop %v1336
    %v1339 = vmul.f32 %v1328, %v1337
    %v1340 = vmul.f32 %v1330, %v1338
    %1341 = vrot.lane.b32.xlu0 %v376, 104
    %v1342 = vpop.permute.xlu0 %1341
    %1343 = vrot.lane.b32.xlu0 %v381, 104
    %v1344 = vpop.permute.xlu0 %1343
    %v1348 = vsel %vm472, %v1339, 0
    %v1351 = vsel %vm472, %v1340, 0
    %1353 = vmatprep.subr.mxu0 0.0
    %1354 = vmatpush1.msra.mxu0 0.0
    %1355 = vmatprep.subr.mxu0 0.0
    %1356 = vmatpush1.msra.mxu0 0.0
    %1357 = vmatprep.subr.mxu0 0.0
    %1358 = vmatpush1.msra.mxu0 0.0
    %1359 = vmatprep.subr.mxu0 0.0
    %1360 = vmatpush1.msra.mxu0 0.0
    %1361 = vmatprep.subr.mxu0 0.0
    %1362 = vmatpush1.msra.mxu0 0.0
    %1363 = vmatprep.subr.mxu0 0.0
    %1364 = vmatpush1.msra.mxu0 0.0
    %1365 = vmatprep.subr.mxu0 0.0
    %1366 = vmatpush1.msra.mxu0 0.0
    %1367 = vmatprep.subr.mxu0 0.0
    %1368 = vmatpush1.msra.mxu0 0.0
    %1369 = vmatprep.subr.mxu0 0.0
    %1370 = vmatpush1.msra.mxu0 0.0
    %1371 = vmatprep.subr.mxu0 0.0
    %1372 = vmatpush1.msra.mxu0 0.0
    %1373 = vmatprep.subr.mxu0 0.0
    %1374 = vmatpush1.msra.mxu0 0.0
    %1375 = vmatprep.subr.mxu0 0.0
    %1376 = vmatpush1.msra.mxu0 0.0
    %1377 = vmatprep.subr.mxu0 0.0
    %1378 = vmatpush1.msra.mxu0 0.0
    %1379 = vmatprep.subr.mxu0 0.0
    %1380 = vmatpush1.msra.mxu0 0.0
    %1381 = vmatprep.subr.mxu0 0.0
    %1382 = vmatpush1.msra.mxu0 %v1344
    %1383 = vmatprep.subr.mxu0 0.0
    %1384 = vmatpush1.msra.mxu0 %v1342
    %1385 = vmatprep.subr.mxu0 0.0
    %1386 = vmatpush2.msra.mxu0 0.0
    %1387 = vmatprep.subr.mxu0 0.0
    %1388 = vmatpush2.msra.mxu0 0.0
    %1389 = vmatprep.subr.mxu0 0.0
    %1390 = vmatpush2.msra.mxu0 0.0
    %1391 = vmatprep.subr.mxu0 0.0
    %1392 = vmatpush2.msra.mxu0 0.0
    %1393 = vmatprep.subr.mxu0 0.0
    %1394 = vmatpush2.msra.mxu0 0.0
    %1395 = vmatprep.subr.mxu0 0.0
    %1396 = vmatpush2.msra.mxu0 0.0
    %1397 = vmatprep.subr.mxu0 0.0
    %1398 = vmatpush2.msra.mxu0 0.0
    %1399 = vmatprep.subr.mxu0 0.0
    %1400 = vmatpush2.msra.mxu0 0.0
    %1401 = vmatprep.subr.mxu0 0.0
    %1402 = vmatpush2.msra.mxu0 0.0
    %1403 = vmatprep.subr.mxu0 0.0
    %1404 = vmatpush2.msra.mxu0 0.0
    %1405 = vmatprep.subr.mxu0 0.0
    %1406 = vmatpush2.msra.mxu0 0.0
    %1407 = vmatprep.subr.mxu0 0.0
    %1408 = vmatpush2.msra.mxu0 0.0
    %1409 = vmatprep.subr.mxu0 0.0
    %1410 = vmatpush2.msra.mxu0 0.0
    %1411 = vmatprep.subr.mxu0 0.0
    %1412 = vmatpush2.msra.mxu0 0.0
    %1413 = vmatprep.subr.mxu0 0.0
    %1414 = vmatpush2.msra.mxu0 0.0
    %1415 = vmatprep.subr.mxu0 0.0
    %1416 = vmatpush2.msra.mxu0 0.0
    %1417 = vmatprep.mubr.f32.mxu0 0.0
    %1418 = vmatmul.mubr.f32.gmra.mxu0 %v1348
    %v1419 = vpop.f32.mrf.mxu0
    %v1420 = vadd.f32 0.0, %v1419
    %v1421 = vpop.f32.mrf.mxu0
    %1422 = vmatprep.mubr.f32.mxu0 0.0
    %1423 = vmatmul.mubr.f32.gmra.mxu0 %v1351
    %v1424 = vpop.f32.mrf.mxu0
    %v1425 = vadd.f32 0.0, %v1424
    %v1426 = vpop.f32.mrf.mxu0
    %1427 = vdwg.mxu0
    %s1428 = scalar_lea.vmem [#allocation7], 24
    %v1429 = vld [vmem:[%s1428] sm:$0xff]
    %v1431 = vsel %vm384, %v1420, 0
    %v1434 = vsel %vm384, %v1425, 0
    %1436 = vmatprep.subr.mxu0 0.0
    %1437 = vmatpush1.msra.mxu0 0.0
    %1438 = vmatprep.subr.mxu0 0.0
    %1439 = vmatpush1.msra.mxu0 0.0
    %1440 = vmatprep.subr.mxu0 0.0
    %1441 = vmatpush1.msra.mxu0 0.0
    %1442 = vmatprep.subr.mxu0 0.0
    %1443 = vmatpush1.msra.mxu0 0.0
    %1444 = vmatprep.subr.mxu0 0.0
    %1445 = vmatpush1.msra.mxu0 0.0
    %1446 = vmatprep.subr.mxu0 0.0
    %1447 = vmatpush1.msra.mxu0 0.0
    %1448 = vmatprep.subr.mxu0 0.0
    %1449 = vmatpush1.msra.mxu0 0.0
    %1450 = vmatprep.subr.mxu0 0.0
    %1451 = vmatpush1.msra.mxu0 0.0
    %1452 = vmatprep.subr.mxu0 0.0
    %1453 = vmatpush1.msra.mxu0 0.0
    %1454 = vmatprep.subr.mxu0 0.0
    %1455 = vmatpush1.msra.mxu0 0.0
    %1456 = vmatprep.subr.mxu0 0.0
    %1457 = vmatpush1.msra.mxu0 0.0
    %1458 = vmatprep.subr.mxu0 0.0
    %1459 = vmatpush1.msra.mxu0 0.0
    %1460 = vmatprep.subr.mxu0 0.0
    %1461 = vmatpush1.msra.mxu0 0.0
    %1462 = vmatprep.subr.mxu0 0.0
    %1463 = vmatpush1.msra.mxu0 0.0
    %1464 = vmatprep.subr.mxu0 0.0
    %1465 = vmatpush1.msra.mxu0 0.0
    %1466 = vmatprep.subr.mxu0 0.0
    %1467 = vmatpush1.msra.mxu0 %v1429
    %1468 = vmatprep.subr.mxu0 0.0
    %1469 = vmatpush2.msra.mxu0 0.0
    %1470 = vmatprep.subr.mxu0 0.0
    %1471 = vmatpush2.msra.mxu0 0.0
    %1472 = vmatprep.subr.mxu0 0.0
    %1473 = vmatpush2.msra.mxu0 0.0
    %1474 = vmatprep.subr.mxu0 0.0
    %1475 = vmatpush2.msra.mxu0 0.0
    %1476 = vmatprep.subr.mxu0 0.0
    %1477 = vmatpush2.msra.mxu0 0.0
    %1478 = vmatprep.subr.mxu0 0.0
    %1479 = vmatpush2.msra.mxu0 0.0
    %1480 = vmatprep.subr.mxu0 0.0
    %1481 = vmatpush2.msra.mxu0 0.0
    %1482 = vmatprep.subr.mxu0 0.0
    %1483 = vmatpush2.msra.mxu0 0.0
    %1484 = vmatprep.subr.mxu0 0.0
    %1485 = vmatpush2.msra.mxu0 0.0
    %1486 = vmatprep.subr.mxu0 0.0
    %1487 = vmatpush2.msra.mxu0 0.0
    %1488 = vmatprep.subr.mxu0 0.0
    %1489 = vmatpush2.msra.mxu0 0.0
    %1490 = vmatprep.subr.mxu0 0.0
    %1491 = vmatpush2.msra.mxu0 0.0
    %1492 = vmatprep.subr.mxu0 0.0
    %1493 = vmatpush2.msra.mxu0 0.0
    %1494 = vmatprep.subr.mxu0 0.0
    %1495 = vmatpush2.msra.mxu0 0.0
    %1496 = vmatprep.subr.mxu0 0.0
    %1497 = vmatpush2.msra.mxu0 0.0
    %1498 = vmatprep.subr.mxu0 0.0
    %1499 = vmatpush2.msra.mxu0 0.0
    %1500 = vmatprep.mubr.f32.mxu0 0.0
    %1501 = vmatmul.mubr.f32.gmra.mxu0 %v1431
    %v1502 = vpop.f32.mrf.mxu0
    %v1503 = vadd.f32 0.0, %v1502
    %v1504 = vpop.f32.mrf.mxu0
    %1505 = vmatprep.mubr.f32.mxu0 0.0
    %1506 = vmatmul.mubr.f32.gmra.mxu0 %v1434
    %v1507 = vpop.f32.mrf.mxu0
    %v1508 = vadd.f32 0.0, %v1507
    %v1509 = vpop.f32.mrf.mxu0
    %1510 = vdwg.mxu0
    %v1511 = vadd.f32 %v1226, %v1503
    %v1512 = vadd.f32 %v1227, %v1508
    %v1513 = vld [vmem:[%s9] sm:$0x1]
    %v1515 = vlaneseq
    %v1516 = vshrl.u32 %v1515, 7
    %v1517 = vsub.s32 0, %v1516
    %v1518 = vrot.slane %v1513, %v1517
    %v1520 = vadd.f32 %v1511, %v1518
    %v1521 = vadd.f32 %v1512, %v1518
    %v1522 = vadd.f32 %v115, %v1520
    %v1523 = vadd.f32 %v116, %v1521
    %v1524 = vsel %vm130, %v1522, 0.0
    %1525 = vadd.xlane.f32.xlu0 %v1524
    %v1526 = vpop.xlane.xlu0 %1525
    %v1527 = vsel %vm130, %v1523, 0.0
    %1528 = vadd.xlane.f32.xlu0 %v1527
    %v1529 = vpop.xlane.xlu0 %1528
    %v1530 = vrcp.pop 32.0
    %v1531 = vmul.f32 %v1526, %v1530
    %v1532 = vmul.f32 %v1529, %v1530
    %v1533 = vmul.f32 %v1522, %v1522
    %v1534 = vmul.f32 %v1523, %v1523
    %v1535 = vsel %vm130, %v1533, 0.0
    %1536 = vadd.xlane.f32.xlu0 %v1535
    %v1537 = vpop.xlane.xlu0 %1536
    %v1538 = vsel %vm130, %v1534, 0.0
    %1539 = vadd.xlane.f32.xlu0 %v1538
    %v1540 = vpop.xlane.xlu0 %1539
    %v1541 = vmul.f32 %v1537, %v1530
    %v1542 = vmul.f32 %v1540, %v1530
    %v1543 = vmul.f32 %v1531, %v1531
    %v1544 = vmul.f32 %v1532, %v1532
    %v1545 = vsub.f32 %v1541, %v1543
    %v1546 = vsub.f32 %v1542, %v1544
    %v1547 = vsub.f32 %v1522, %v1531
    %v1548 = vsub.f32 %v1523, %v1532
    %v1549 = vadd.f32 %v1545, 1e-05
    %v1550 = vadd.f32 %v1546, 1e-05
    %v1551 = vrsqrt.pop %v1549
    %v1552 = vrsqrt.pop %v1550
    %v1553 = vmul.f32 %v1547, %v1551
    %v1554 = vmul.f32 %v1548, %v1552
    %v1555 = vld [vmem:[%s10] sm:$0x1]
    %v1557 = vlaneseq
    %v1558 = vshrl.u32 %v1557, 7
    %v1559 = vsub.s32 0, %v1558
    %v1560 = vrot.slane %v1555, %v1559
    %v1562 = vmul.f32 %v1553, %v1560
    %v1563 = vmul.f32 %v1554, %v1560
    %v1564 = vld [vmem:[%s11] sm:$0x1]
    %v1566 = vlaneseq
    %v1567 = vshrl.u32 %v1566, 7
    %v1568 = vsub.s32 0, %v1567
    %v1569 = vrot.slane %v1564, %v1568
    %v1571 = vadd.f32 %v1562, %v1569
    %v1572 = vadd.f32 %v1563, %v1569
    %v1573 = vld [vmem:[#allocation8] sm:$0xff]
    %v1574 = vld [vmem:[#allocation8 + $0x8] sm:$0xff]
    %v1575 = vld [vmem:[#allocation8 + $0x10] sm:$0xff]
    %v1576 = vld [vmem:[#allocation8 + $0x18] sm:$0xff]
    %v1577 = vld [vmem:[%s13] sm:$0x1]
    %v1579 = vlaneseq
    %v1580 = vshrl.u32 %v1579, 7
    %v1581 = vsub.s32 0, %v1580
    %v1582 = vrot.slane %v1577, %v1581
    %v1585 = vsel %vm130, %v1571, 0
    %v1588 = vsel %vm130, %v1572, 0
    %1590 = vmatprep.subr.mxu0 0.0
    %1591 = vmatpush1.msra.mxu0 0.0
    %1592 = vmatprep.subr.mxu0 0.0
    %1593 = vmatpush1.msra.mxu0 0.0
    %1594 = vmatprep.subr.mxu0 0.0
    %1595 = vmatpush1.msra.mxu0 0.0
    %1596 = vmatprep.subr.mxu0 0.0
    %1597 = vmatpush1.msra.mxu0 0.0
    %1598 = vmatprep.subr.mxu0 0.0
    %1599 = vmatpush1.msra.mxu0 0.0
    %1600 = vmatprep.subr.mxu0 0.0
    %1601 = vmatpush1.msra.mxu0 0.0
    %1602 = vmatprep.subr.mxu0 0.0
    %1603 = vmatpush1.msra.mxu0 0.0
    %1604 = vmatprep.subr.mxu0 0.0
    %1605 = vmatpush1.msra.mxu0 0.0
    %1606 = vmatprep.subr.mxu0 0.0
    %1607 = vmatpush1.msra.mxu0 0.0
    %1608 = vmatprep.subr.mxu0 0.0
    %1609 = vmatpush1.msra.mxu0 0.0
    %1610 = vmatprep.subr.mxu0 0.0
    %1611 = vmatpush1.msra.mxu0 0.0
    %1612 = vmatprep.subr.mxu0 0.0
    %1613 = vmatpush1.msra.mxu0 0.0
    %1614 = vmatprep.subr.mxu0 0.0
    %1615 = vmatpush1.msra.mxu0 %v1576
    %1616 = vmatprep.subr.mxu0 0.0
    %1617 = vmatpush1.msra.mxu0 %v1575
    %1618 = vmatprep.subr.mxu0 0.0
    %1619 = vmatpush1.msra.mxu0 %v1574
    %1620 = vmatprep.subr.mxu0 0.0
    %1621 = vmatpush1.msra.mxu0 %v1573
    %1622 = vmatprep.subr.mxu0 0.0
    %1623 = vmatpush2.msra.mxu0 0.0
    %1624 = vmatprep.subr.mxu0 0.0
    %1625 = vmatpush2.msra.mxu0 0.0
    %1626 = vmatprep.subr.mxu0 0.0
    %1627 = vmatpush2.msra.mxu0 0.0
    %1628 = vmatprep.subr.mxu0 0.0
    %1629 = vmatpush2.msra.mxu0 0.0
    %1630 = vmatprep.subr.mxu0 0.0
    %1631 = vmatpush2.msra.mxu0 0.0
    %1632 = vmatprep.subr.mxu0 0.0
    %1633 = vmatpush2.msra.mxu0 0.0
    %1634 = vmatprep.subr.mxu0 0.0
    %1635 = vmatpush2.msra.mxu0 0.0
    %1636 = vmatprep.subr.mxu0 0.0
    %1637 = vmatpush2.msra.mxu0 0.0
    %1638 = vmatprep.subr.mxu0 0.0
    %1639 = vmatpush2.msra.mxu0 0.0
    %1640 = vmatprep.subr.mxu0 0.0
    %1641 = vmatpush2.msra.mxu0 0.0
    %1642 = vmatprep.subr.mxu0 0.0
    %1643 = vmatpush2.msra.mxu0 0.0
    %1644 = vmatprep.subr.mxu0 0.0
    %1645 = vmatpush2.msra.mxu0 0.0
    %1646 = vmatprep.subr.mxu0 0.0
    %1647 = vmatpush2.msra.mxu0 0.0
    %1648 = vmatprep.subr.mxu0 0.0
    %1649 = vmatpush2.msra.mxu0 0.0
    %1650 = vmatprep.subr.mxu0 0.0
    %1651 = vmatpush2.msra.mxu0 0.0
    %1652 = vmatprep.subr.mxu0 0.0
    %1653 = vmatpush2.msra.mxu0 0.0
    %1654 = vmatprep.mubr.f32.mxu0 0.0
    %1655 = vmatmul.mubr.f32.gmra.mxu0 %v1585
    %v1656 = vpop.f32.mrf.mxu0
    %v1657 = vadd.f32 %v1582, %v1656
    %v1658 = vpop.f32.mrf.mxu0
    %1659 = vmatprep.mubr.f32.mxu0 0.0
    %1660 = vmatmul.mubr.f32.gmra.mxu0 %v1588
    %v1661 = vpop.f32.mrf.mxu0
    %v1662 = vadd.f32 %v1582, %v1661
    %v1663 = vpop.f32.mrf.mxu0
    %1664 = vdwg.mxu0
    %vm1665 = vcmp.ge.f32.partialorder %v1657, 0.0
    %vm1666 = vcmp.ge.f32.partialorder %v1662, 0.0
    %v1667 = vmul.f32 %v1657, 0.01
    %v1668 = vmul.f32 %v1662, 0.01
    %v1669 = vsel %vm1665, %v1657, %v1667
    %v1670 = vsel %vm1666, %v1662, %v1668
    %v1671 = vld [vmem:[%s14] sm:$0xff]
    %v1672 = vld [vmem:[%s14 + $0x8] sm:$0xff]
    %v1673 = vld [vmem:[%s14 + $0x10] sm:$0xff]
    %v1674 = vld [vmem:[%s14 + $0x18] sm:$0xff]
    %v1675 = vld [vmem:[%s14 + $0x20] sm:$0xff]
    %v1676 = vld [vmem:[%s14 + $0x28] sm:$0xff]
    %v1677 = vld [vmem:[%s14 + $0x30] sm:$0xff]
    %v1678 = vld [vmem:[%s14 + $0x38] sm:$0xff]
    %v1679 = vld [vmem:[%s15] sm:$0x1]
    %v1681 = vlaneseq
    %v1682 = vshrl.u32 %v1681, 7
    %v1683 = vsub.s32 0, %v1682
    %v1684 = vrot.slane %v1679, %v1683
    %vm1686 = vcmask 523264
    %v1688 = vsel %vm1686, %v1669, 0
    %v1691 = vsel %vm1686, %v1670, 0
    %1693 = vmatprep.subr.mxu0 0.0
    %1694 = vmatpush1.msra.mxu0 0.0
    %1695 = vmatprep.subr.mxu0 0.0
    %1696 = vmatpush1.msra.mxu0 0.0
    %1697 = vmatprep.subr.mxu0 0.0
    %1698 = vmatpush1.msra.mxu0 0.0
    %1699 = vmatprep.subr.mxu0 0.0
    %1700 = vmatpush1.msra.mxu0 0.0
    %1701 = vmatprep.subr.mxu0 0.0
    %1702 = vmatpush1.msra.mxu0 0.0
    %1703 = vmatprep.subr.mxu0 0.0
    %1704 = vmatpush1.msra.mxu0 0.0
    %1705 = vmatprep.subr.mxu0 0.0
    %1706 = vmatpush1.msra.mxu0 0.0
    %1707 = vmatprep.subr.mxu0 0.0
    %1708 = vmatpush1.msra.mxu0 0.0
    %1709 = vmatprep.subr.mxu0 0.0
    %1710 = vmatpush1.msra.mxu0 %v1678
    %1711 = vmatprep.subr.mxu0 0.0
    %1712 = vmatpush1.msra.mxu0 %v1677
    %1713 = vmatprep.subr.mxu0 0.0
    %1714 = vmatpush1.msra.mxu0 %v1676
    %1715 = vmatprep.subr.mxu0 0.0
    %1716 = vmatpush1.msra.mxu0 %v1675
    %1717 = vmatprep.subr.mxu0 0.0
    %1718 = vmatpush1.msra.mxu0 %v1674
    %1719 = vmatprep.subr.mxu0 0.0
    %1720 = vmatpush1.msra.mxu0 %v1673
    %1721 = vmatprep.subr.mxu0 0.0
    %1722 = vmatpush1.msra.mxu0 %v1672
    %1723 = vmatprep.subr.mxu0 0.0
    %1724 = vmatpush1.msra.mxu0 %v1671
    %1725 = vmatprep.subr.mxu0 0.0
    %1726 = vmatpush2.msra.mxu0 0.0
    %1727 = vmatprep.subr.mxu0 0.0
    %1728 = vmatpush2.msra.mxu0 0.0
    %1729 = vmatprep.subr.mxu0 0.0
    %1730 = vmatpush2.msra.mxu0 0.0
    %1731 = vmatprep.subr.mxu0 0.0
    %1732 = vmatpush2.msra.mxu0 0.0
    %1733 = vmatprep.subr.mxu0 0.0
    %1734 = vmatpush2.msra.mxu0 0.0
    %1735 = vmatprep.subr.mxu0 0.0
    %1736 = vmatpush2.msra.mxu0 0.0
    %1737 = vmatprep.subr.mxu0 0.0
    %1738 = vmatpush2.msra.mxu0 0.0
    %1739 = vmatprep.subr.mxu0 0.0
    %1740 = vmatpush2.msra.mxu0 0.0
    %1741 = vmatprep.subr.mxu0 0.0
    %1742 = vmatpush2.msra.mxu0 0.0
    %1743 = vmatprep.subr.mxu0 0.0
    %1744 = vmatpush2.msra.mxu0 0.0
    %1745 = vmatprep.subr.mxu0 0.0
    %1746 = vmatpush2.msra.mxu0 0.0
    %1747 = vmatprep.subr.mxu0 0.0
    %1748 = vmatpush2.msra.mxu0 0.0
    %1749 = vmatprep.subr.mxu0 0.0
    %1750 = vmatpush2.msra.mxu0 0.0
    %1751 = vmatprep.subr.mxu0 0.0
    %1752 = vmatpush2.msra.mxu0 0.0
    %1753 = vmatprep.subr.mxu0 0.0
    %1754 = vmatpush2.msra.mxu0 0.0
    %1755 = vmatprep.subr.mxu0 0.0
    %1756 = vmatpush2.msra.mxu0 0.0
    %1757 = vmatprep.mubr.f32.mxu0 0.0
    %1758 = vmatmul.mubr.f32.gmra.mxu0 %v1688
    %v1759 = vpop.f32.mrf.mxu0
    %v1760 = vadd.f32 %v1684, %v1759
    %v1761 = vpop.f32.mrf.mxu0
    %1762 = vmatprep.mubr.f32.mxu0 0.0
    %1763 = vmatmul.mubr.f32.gmra.mxu0 %v1691
    %v1764 = vpop.f32.mrf.mxu0
    %v1765 = vadd.f32 %v1684, %v1764
    %v1766 = vpop.f32.mrf.mxu0
    %1767 = vdwg.mxu0
    %v1768 = vadd.f32 %v1571, %v1760
    %v1769 = vadd.f32 %v1572, %v1765
    %v1770 = vsel %vm130, %v1768, 0.0
    %1771 = vadd.xlane.f32.xlu0 %v1770
    %v1772 = vpop.xlane.xlu0 %1771
    %v1773 = vsel %vm130, %v1769, 0.0
    %1774 = vadd.xlane.f32.xlu0 %v1773
    %v1775 = vpop.xlane.xlu0 %1774
    %v1776 = vmul.f32 %v1772, %v1530
    %v1777 = vmul.f32 %v1775, %v1530
    %v1778 = vmul.f32 %v1768, %v1768
    %v1779 = vmul.f32 %v1769, %v1769
    %v1780 = vsel %vm130, %v1778, 0.0
    %1781 = vadd.xlane.f32.xlu0 %v1780
    %v1782 = vpop.xlane.xlu0 %1781
    %v1783 = vsel %vm130, %v1779, 0.0
    %1784 = vadd.xlane.f32.xlu0 %v1783
    %v1785 = vpop.xlane.xlu0 %1784
    %v1786 = vmul.f32 %v1782, %v1530
    %v1787 = vmul.f32 %v1785, %v1530
    %v1788 = vmul.f32 %v1776, %v1776
    %v1789 = vmul.f32 %v1777, %v1777
    %v1790 = vsub.f32 %v1786, %v1788
    %v1791 = vsub.f32 %v1787, %v1789
    %v1792 = vsub.f32 %v1768, %v1776
    %v1793 = vsub.f32 %v1769, %v1777
    %v1794 = vadd.f32 %v1790, 1e-05
    %v1795 = vadd.f32 %v1791, 1e-05
    %v1796 = vrsqrt.pop %v1794
    %v1797 = vrsqrt.pop %v1795
    %v1798 = vmul.f32 %v1792, %v1796
    %v1799 = vmul.f32 %v1793, %v1797
    %v1800 = vld [vmem:[%s16] sm:$0x1]
    %v1802 = vlaneseq
    %v1803 = vshrl.u32 %v1802, 7
    %v1804 = vsub.s32 0, %v1803
    %v1805 = vrot.slane %v1800, %v1804
    %v1807 = vmul.f32 %v1798, %v1805
    %v1808 = vmul.f32 %v1799, %v1805
    %v1809 = vld [vmem:[%s17] sm:$0x1]
    %v1811 = vlaneseq
    %v1812 = vshrl.u32 %v1811, 7
    %v1813 = vsub.s32 0, %v1812
    %v1814 = vrot.slane %v1809, %v1813
    %v1816 = vadd.f32 %v1807, %v1814
    %v1817 = vadd.f32 %v1808, %v1814
    %1818 = vst.msk [vmem:[#allocation10] sm:$0xff] %vm130, %v1816
    %1819 = vst.msk [vmem:[#allocation10 + $0x8] sm:$0xff] %vm130, %v1817
    // Predicated region
    $region90: #{tpu_custom_call.1} parent=1 // pred_check
      _
    $region91: #{tpu_custom_call.1} parent=1 // pred_check_branch
      %1821 = sbr.rel (0) target = $region93
    $region92: #{tpu_custom_call.1} parent=1 // pred_region
      %s1823 = ssub.s32 256, 256
      %1824 = vsyncadd [#allocation4], %s1823
      %s1825 = sshll.u32 [#allocation10], 4
      %s1826 = int_to_ptr.vmem [resolvable:$true] %s1825
      %1831 = dma.vmem_to_hbm [thread:$0]  %s1826, 256, %s18, [#allocation4], 128, 128, 8
    $region93: #{tpu_custom_call.1} parent=1 // pred_fallthru
      _
    // Predicated region
    $region94: #{tpu_custom_call.1} parent=1 // pred_check
      _
    $region95: #{tpu_custom_call.1} parent=1 // pred_check_branch
      %1833 = sbr.rel (0) target = $region97
    $region96: #{tpu_custom_call.1} parent=1 // pred_region
      %1834 = dma.done [#allocation4], 256
    $region97: #{tpu_custom_call.1} parent=1 // pred_fallthru
      _
    %1835 = vsyncpa [#allocation3], 1
    %1836 = vsyncpa [#allocation6], 1
    %1837 = vsyncpa [#allocation9], 1
    %1838 = vsyncpa [#allocation4], 1

</llo_original>
